<compile_context>
chip_gen: v7x
topology: tpu7x:2x2x1
jax: 0.10.0
libtpu: 0.0.40
codegen_flags: <defaults>
</compile_context>

<pallas_src>
import functools
import numpy as np
import jax
import jax.numpy as jnp
from jax.experimental import pallas as pl
from jax.experimental.pallas import tpu as pltpu

RRELU_SLOPE = (1.0 / 8.0 + 1.0 / 3.0) / 2.0  # RReLU eval-mode slope
EPS = 1e-5


def _round_up(x, m):
    return ((x + m - 1) // m) * m


def _conv3d_gn_rrelu_kernel(x_ref, w_ref, mask_ref, g_ref, bt_ref, out_ref, col_ref,
                            *, cin_p, q_pad, plane, row, n_valid):
    """One sample: fused 3x3x3 conv (single K=27*cin_p matmul over an in-kernel
    im2col slab) + per-channel GroupNorm + RReLU, all in (C, spatial) layout."""
    # Build im2col: 27 lane-shifted copies of the flattened padded volume.
    # Row offsets t*cin_p are multiples of 8 (f32 tile aligned); lane offsets are
    # the flattened tap offsets (cheap lane shifts, no multi-dim relayout).
    for kd in range(3):
        for kh in range(3):
            for kw in range(3):
                t = (kd * 3 + kh) * 3 + kw
                off = kd * plane + kh * row + kw
                col_ref[t * cin_p:(t + 1) * cin_p, :] = x_ref[0, :, off:off + q_pad]

    # One big contraction on the MXU: (Cout_p, 27*cin_p) x (27*cin_p, q_pad),
    # bf16 inputs, f32 accumulation.
    col = col_ref[...].astype(jnp.bfloat16)
    acc = jnp.dot(w_ref[...], col, preferred_element_type=jnp.float32)  # (Cout_p, q_pad)

    # GroupNorm(num_groups == num_channels): per-channel stats over the n_valid
    # real spatial positions (mask kills padded rows/cols of the flattened grid).
    mask = mask_ref[...]                                  # (1, q_pad)
    inv_n = 1.0 / n_valid
    mean = jnp.sum(acc * mask, axis=-1, keepdims=True) * inv_n
    cent = (acc - mean) * mask
    var = jnp.sum(cent * cent, axis=-1, keepdims=True) * inv_n
    scale = g_ref[...] * jax.lax.rsqrt(var + EPS)         # gamma folded into one scale
    y = (acc - mean) * scale + bt_ref[...]

    # RReLU (eval mode) == leaky relu with fixed slope.
    out_ref[0] = jnp.where(y >= 0.0, y, y * RRELU_SLOPE)


def single_conv_block(x_ndhwc, w_dhwio, b, gamma, beta):
    """SingleConvBlock forward. x: (N, D, H, W, Cin) -> (N, D, H, W, Cout).
    `b` (conv bias) is accepted for interface fidelity but cancels exactly under
    per-channel GroupNorm, so it is not passed to the kernel."""
    del b
    N, D, H, W, Cin = x_ndhwc.shape
    Cout = w_dhwio.shape[-1]
    Cin_p = _round_up(max(Cin, 8), 8)
    Cout_p = _round_up(max(Cout, 8), 8)

    plane = (H + 2) * (W + 2)          # depth stride in the padded flattened volume
    row = W + 2                        # height stride
    Qz = D * plane                     # flattened output positions (incl. invalid h/w)
    q_pad = _round_up(Qz, 128)         # lane-dense compute/output width
    max_off = 2 * plane + 2 * row + 2  # largest tap offset
    sp = (D + 2) * plane               # flattened padded volume size
    sp_ext = _round_up(q_pad + max_off, 128)

    # Channels-first, halo-padded, flattened spatial, zero tail.
    xc = jnp.transpose(x_ndhwc, (0, 4, 1, 2, 3))                       # (N, Cin, D, H, W)
    xp = jnp.pad(xc, ((0, 0), (0, Cin_p - Cin), (1, 1), (1, 1), (1, 1)))
    xf = jnp.pad(xp.reshape(N, Cin_p, sp),
                 ((0, 0), (0, 0), (0, sp_ext - sp))).astype(jnp.float32)

    # Weight packed as (Cout_p, 27*Cin_p), tap-major / cin-minor, bf16 for the MXU.
    wt = jnp.transpose(w_dhwio, (4, 0, 1, 2, 3))                       # (Cout, 3,3,3, Cin)
    wt = jnp.pad(wt, ((0, Cout_p - Cout), (0, 0), (0, 0), (0, 0), (0, Cin_p - Cin)))
    w2 = wt.reshape(Cout_p, 27 * Cin_p).astype(jnp.bfloat16)

    # Validity mask over the flattened padded-grid output positions.
    q_idx = np.arange(q_pad)
    valid = (q_idx < Qz) & (q_idx % row < W) & ((q_idx // row) % (H + 2) < H)
    mask = jnp.asarray(valid.astype(np.float32))[None, :]              # (1, q_pad)

    g2 = jnp.pad(gamma.astype(jnp.float32), (0, Cout_p - Cout)).reshape(Cout_p, 1)
    bt2 = jnp.pad(beta.astype(jnp.float32), (0, Cout_p - Cout)).reshape(Cout_p, 1)

    kernel = functools.partial(
        _conv3d_gn_rrelu_kernel, cin_p=Cin_p, q_pad=q_pad,
        plane=plane, row=row, n_valid=D * H * W)

    out = pl.pallas_call(
        kernel,
        out_shape=jax.ShapeDtypeStruct((N, Cout_p, q_pad), jnp.float32),
        grid=(N,),
        in_specs=[
            pl.BlockSpec((1, Cin_p, sp_ext), lambda n: (n, 0, 0)),     # x (flattened, padded)
            pl.BlockSpec((Cout_p, 27 * Cin_p), lambda n: (0, 0)),      # packed weight
            pl.BlockSpec((1, q_pad), lambda n: (0, 0)),                # validity mask
            pl.BlockSpec((Cout_p, 1), lambda n: (0, 0)),               # gamma
            pl.BlockSpec((Cout_p, 1), lambda n: (0, 0)),               # beta
        ],
        out_specs=pl.BlockSpec((1, Cout_p, q_pad), lambda n: (n, 0, 0)),
        scratch_shapes=[pltpu.VMEM((27 * Cin_p, q_pad), jnp.float32)], # im2col slab
        compiler_params=pltpu.CompilerParams(
            dimension_semantics=("parallel",)),
    )(xf, w2, mask, g2, bt2)

    # Extract valid positions and go back to NDHWC (wrapper-side layout plumbing).
    out = out[:, :Cout, :Qz].reshape(N, Cout, D, H + 2, W + 2)[:, :, :, :H, :W]
    return jnp.transpose(out, (0, 2, 3, 4, 1))


# ---------------- pure-JAX reference (for correctness check) ----------------
def _ref_single_conv_block(x, w, b, gamma, beta):
    y = jax.lax.conv_general_dilated(
        x, w, window_strides=(1, 1, 1),
        padding=((1, 1), (1, 1), (1, 1)),
        dimension_numbers=('NDHWC', 'DHWIO', 'NDHWC'),
        precision=jax.lax.Precision.HIGHEST)
    y = y + b
    mean = y.mean(axis=(1, 2, 3), keepdims=True)
    var = ((y - mean) ** 2).mean(axis=(1, 2, 3), keepdims=True)
    y = (y - mean) / jnp.sqrt(var + EPS) * gamma + beta
    return jnp.where(y >= 0.0, y, y * RRELU_SLOPE)


if __name__ == "__main__":
    key = jax.random.PRNGKey(0)
    kx, kw, kb, kg, kbt = jax.random.split(key, 5)

    N, in_ch, out_ch = 2, 4, 8
    D = H = W = 8

    # PyTorch-convention input (NCDHW), transposed to the wrapper layout NDHWC.
    x_ncdhw = jax.random.normal(kx, (N, in_ch, D, H, W), jnp.float32)
    x = jnp.transpose(x_ncdhw, (0, 2, 3, 4, 1))

    fan_in = in_ch * 27
    bound = 1.0 / np.sqrt(fan_in)
    w = jax.random.uniform(kw, (3, 3, 3, in_ch, out_ch), jnp.float32, -bound, bound)
    b = jax.random.uniform(kb, (out_ch,), jnp.float32, -bound, bound)
    gamma = 1.0 + 0.1 * jax.random.normal(kg, (out_ch,), jnp.float32)
    beta = 0.1 * jax.random.normal(kbt, (out_ch,), jnp.float32)

    out = single_conv_block(x, w, b, gamma, beta)
    out = jax.block_until_ready(out)

    ref = _ref_single_conv_block(x, w, b, gamma, beta)
    # bf16 MXU inputs with f32 accumulation vs. f32 HIGHEST reference.
    np.testing.assert_allclose(np.asarray(out), np.asarray(ref), rtol=2e-2, atol=2e-2)

    out_ncdhw = jnp.transpose(out, (0, 4, 1, 2, 3))  # back to PyTorch NCDHW
    assert out_ncdhw.shape == (N, out_ch, D, H, W)
    print("KERNEL_OK")
</pallas_src>

<mosaic_0001>
module attributes {stable_mosaic.version = 11 : i64} {
  func.func @_conv3d_gn_rrelu_kernel(%arg0: i32, %arg1: memref<1x8x1152xf32, #tpu.memory_space<vmem>>, %arg2: memref<8x216xbf16, #tpu.memory_space<vmem>>, %arg3: memref<1x896xf32, #tpu.memory_space<vmem>>, %arg4: memref<8x1xf32, #tpu.memory_space<vmem>>, %arg5: memref<8x1xf32, #tpu.memory_space<vmem>>, %arg6: memref<1x8x896xf32, #tpu.memory_space<vmem>>, %arg7: memref<216x896xf32, #tpu.memory_space<vmem>>) attributes {dimension_semantics = [#tpu.dimension_semantics<parallel>], iteration_bounds = array<i64: 2>, scalar_prefetch = 0 : i64, scratch_operands = 1 : i64, tpu.core_type = #tpu.core_type<tc>, window_params = [{transform_indices = @transform_0, window_bounds = array<i64: 1, 8, 1152>}, {pipeline_mode = #tpu.pipeline_mode<synchronous>, transform_indices = @transform_1, window_bounds = array<i64: 8, 216>}, {pipeline_mode = #tpu.pipeline_mode<synchronous>, transform_indices = @transform_2, window_bounds = array<i64: 1, 896>}, {pipeline_mode = #tpu.pipeline_mode<synchronous>, transform_indices = @transform_3, window_bounds = array<i64: 8, 1>}, {pipeline_mode = #tpu.pipeline_mode<synchronous>, transform_indices = @transform_4, window_bounds = array<i64: 8, 1>}, {transform_indices = @transform_5, window_bounds = array<i64: 1, 8, 896>}]} {
    %c0 = arith.constant 0 : index
    %c0_0 = arith.constant 0 : index
    %c0_1 = arith.constant 0 : index
    %0 = vector.load %arg1[%c0, %c0_0, %c0_1] : memref<1x8x1152xf32, #tpu.memory_space<vmem>>, vector<1x8x896xf32>
    %1 = vector.shape_cast %0 : vector<1x8x896xf32> to vector<8x896xf32>
    %c0_2 = arith.constant 0 : index
    %c0_3 = arith.constant 0 : index
    %2 = vector.load %arg7[%c0_2, %c0_3] : memref<216x896xf32, #tpu.memory_space<vmem>>, vector<8x896xf32>
    tpu.vector_store %arg7[%c0_2, %c0_3], %1 {strides = array<i32>} : memref<216x896xf32, #tpu.memory_space<vmem>>, vector<8x896xf32>,
    %c0_4 = arith.constant 0 : index
    %c0_5 = arith.constant 0 : index
    %c1 = arith.constant 1 : index
    %3 = vector.load %arg1[%c0_4, %c0_5, %c1] : memref<1x8x1152xf32, #tpu.memory_space<vmem>>, vector<1x8x896xf32>
    %4 = vector.shape_cast %3 : vector<1x8x896xf32> to vector<8x896xf32>
    %c8 = arith.constant 8 : index
    %c0_6 = arith.constant 0 : index
    %5 = vector.load %arg7[%c8, %c0_6] : memref<216x896xf32, #tpu.memory_space<vmem>>, vector<8x896xf32>
    tpu.vector_store %arg7[%c8, %c0_6], %4 {strides = array<i32>} : memref<216x896xf32, #tpu.memory_space<vmem>>, vector<8x896xf32>,
    %c0_7 = arith.constant 0 : index
    %c0_8 = arith.constant 0 : index
    %c2 = arith.constant 2 : index
    %6 = vector.load %arg1[%c0_7, %c0_8, %c2] : memref<1x8x1152xf32, #tpu.memory_space<vmem>>, vector<1x8x896xf32>
    %7 = vector.shape_cast %6 : vector<1x8x896xf32> to vector<8x896xf32>
    %c16 = arith.constant 16 : index
    %c0_9 = arith.constant 0 : index
    %8 = vector.load %arg7[%c16, %c0_9] : memref<216x896xf32, #tpu.memory_space<vmem>>, vector<8x896xf32>
    tpu.vector_store %arg7[%c16, %c0_9], %7 {strides = array<i32>} : memref<216x896xf32, #tpu.memory_space<vmem>>, vector<8x896xf32>,
    %c0_10 = arith.constant 0 : index
    %c0_11 = arith.constant 0 : index
    %c10 = arith.constant 10 : index
    %9 = vector.load %arg1[%c0_10, %c0_11, %c10] : memref<1x8x1152xf32, #tpu.memory_space<vmem>>, vector<1x8x896xf32>
    %10 = vector.shape_cast %9 : vector<1x8x896xf32> to vector<8x896xf32>
    %c24 = arith.constant 24 : index
    %c0_12 = arith.constant 0 : index
    %11 = vector.load %arg7[%c24, %c0_12] : memref<216x896xf32, #tpu.memory_space<vmem>>, vector<8x896xf32>
    tpu.vector_store %arg7[%c24, %c0_12], %10 {strides = array<i32>} : memref<216x896xf32, #tpu.memory_space<vmem>>, vector<8x896xf32>,
    %c0_13 = arith.constant 0 : index
    %c0_14 = arith.constant 0 : index
    %c11 = arith.constant 11 : index
    %12 = vector.load %arg1[%c0_13, %c0_14, %c11] : memref<1x8x1152xf32, #tpu.memory_space<vmem>>, vector<1x8x896xf32>
    %13 = vector.shape_cast %12 : vector<1x8x896xf32> to vector<8x896xf32>
    %c32 = arith.constant 32 : index
    %c0_15 = arith.constant 0 : index
    %14 = vector.load %arg7[%c32, %c0_15] : memref<216x896xf32, #tpu.memory_space<vmem>>, vector<8x896xf32>
    tpu.vector_store %arg7[%c32, %c0_15], %13 {strides = array<i32>} : memref<216x896xf32, #tpu.memory_space<vmem>>, vector<8x896xf32>,
    %c0_16 = arith.constant 0 : index
    %c0_17 = arith.constant 0 : index
    %c12 = arith.constant 12 : index
    %15 = vector.load %arg1[%c0_16, %c0_17, %c12] : memref<1x8x1152xf32, #tpu.memory_space<vmem>>, vector<1x8x896xf32>
    %16 = vector.shape_cast %15 : vector<1x8x896xf32> to vector<8x896xf32>
    %c40 = arith.constant 40 : index
    %c0_18 = arith.constant 0 : index
    %17 = vector.load %arg7[%c40, %c0_18] : memref<216x896xf32, #tpu.memory_space<vmem>>, vector<8x896xf32>
    tpu.vector_store %arg7[%c40, %c0_18], %16 {strides = array<i32>} : memref<216x896xf32, #tpu.memory_space<vmem>>, vector<8x896xf32>,
    %c0_19 = arith.constant 0 : index
    %c0_20 = arith.constant 0 : index
    %c20 = arith.constant 20 : index
    %18 = vector.load %arg1[%c0_19, %c0_20, %c20] : memref<1x8x1152xf32, #tpu.memory_space<vmem>>, vector<1x8x896xf32>
    %19 = vector.shape_cast %18 : vector<1x8x896xf32> to vector<8x896xf32>
    %c48 = arith.constant 48 : index
    %c0_21 = arith.constant 0 : index
    %20 = vector.load %arg7[%c48, %c0_21] : memref<216x896xf32, #tpu.memory_space<vmem>>, vector<8x896xf32>
    tpu.vector_store %arg7[%c48, %c0_21], %19 {strides = array<i32>} : memref<216x896xf32, #tpu.memory_space<vmem>>, vector<8x896xf32>,
    %c0_22 = arith.constant 0 : index
    %c0_23 = arith.constant 0 : index
    %c21 = arith.constant 21 : index
    %21 = vector.load %arg1[%c0_22, %c0_23, %c21] : memref<1x8x1152xf32, #tpu.memory_space<vmem>>, vector<1x8x896xf32>
    %22 = vector.shape_cast %21 : vector<1x8x896xf32> to vector<8x896xf32>
    %c56 = arith.constant 56 : index
    %c0_24 = arith.constant 0 : index
    %23 = vector.load %arg7[%c56, %c0_24] : memref<216x896xf32, #tpu.memory_space<vmem>>, vector<8x896xf32>
    tpu.vector_store %arg7[%c56, %c0_24], %22 {strides = array<i32>} : memref<216x896xf32, #tpu.memory_space<vmem>>, vector<8x896xf32>,
    %c0_25 = arith.constant 0 : index
    %c0_26 = arith.constant 0 : index
    %c22 = arith.constant 22 : index
    %24 = vector.load %arg1[%c0_25, %c0_26, %c22] : memref<1x8x1152xf32, #tpu.memory_space<vmem>>, vector<1x8x896xf32>
    %25 = vector.shape_cast %24 : vector<1x8x896xf32> to vector<8x896xf32>
    %c64 = arith.constant 64 : index
    %c0_27 = arith.constant 0 : index
    %26 = vector.load %arg7[%c64, %c0_27] : memref<216x896xf32, #tpu.memory_space<vmem>>, vector<8x896xf32>
    tpu.vector_store %arg7[%c64, %c0_27], %25 {strides = array<i32>} : memref<216x896xf32, #tpu.memory_space<vmem>>, vector<8x896xf32>,
    %c0_28 = arith.constant 0 : index
    %c0_29 = arith.constant 0 : index
    %c100 = arith.constant 100 : index
    %27 = vector.load %arg1[%c0_28, %c0_29, %c100] : memref<1x8x1152xf32, #tpu.memory_space<vmem>>, vector<1x8x896xf32>
    %28 = vector.shape_cast %27 : vector<1x8x896xf32> to vector<8x896xf32>
    %c72 = arith.constant 72 : index
    %c0_30 = arith.constant 0 : index
    %29 = vector.load %arg7[%c72, %c0_30] : memref<216x896xf32, #tpu.memory_space<vmem>>, vector<8x896xf32>
    tpu.vector_store %arg7[%c72, %c0_30], %28 {strides = array<i32>} : memref<216x896xf32, #tpu.memory_space<vmem>>, vector<8x896xf32>,
    %c0_31 = arith.constant 0 : index
    %c0_32 = arith.constant 0 : index
    %c101 = arith.constant 101 : index
    %30 = vector.load %arg1[%c0_31, %c0_32, %c101] : memref<1x8x1152xf32, #tpu.memory_space<vmem>>, vector<1x8x896xf32>
    %31 = vector.shape_cast %30 : vector<1x8x896xf32> to vector<8x896xf32>
    %c80 = arith.constant 80 : index
    %c0_33 = arith.constant 0 : index
    %32 = vector.load %arg7[%c80, %c0_33] : memref<216x896xf32, #tpu.memory_space<vmem>>, vector<8x896xf32>
    tpu.vector_store %arg7[%c80, %c0_33], %31 {strides = array<i32>} : memref<216x896xf32, #tpu.memory_space<vmem>>, vector<8x896xf32>,
    %c0_34 = arith.constant 0 : index
    %c0_35 = arith.constant 0 : index
    %c102 = arith.constant 102 : index
    %33 = vector.load %arg1[%c0_34, %c0_35, %c102] : memref<1x8x1152xf32, #tpu.memory_space<vmem>>, vector<1x8x896xf32>
    %34 = vector.shape_cast %33 : vector<1x8x896xf32> to vector<8x896xf32>
    %c88 = arith.constant 88 : index
    %c0_36 = arith.constant 0 : index
    %35 = vector.load %arg7[%c88, %c0_36] : memref<216x896xf32, #tpu.memory_space<vmem>>, vector<8x896xf32>
    tpu.vector_store %arg7[%c88, %c0_36], %34 {strides = array<i32>} : memref<216x896xf32, #tpu.memory_space<vmem>>, vector<8x896xf32>,
    %c0_37 = arith.constant 0 : index
    %c0_38 = arith.constant 0 : index
    %c110 = arith.constant 110 : index
    %36 = vector.load %arg1[%c0_37, %c0_38, %c110] : memref<1x8x1152xf32, #tpu.memory_space<vmem>>, vector<1x8x896xf32>
    %37 = vector.shape_cast %36 : vector<1x8x896xf32> to vector<8x896xf32>
    %c96 = arith.constant 96 : index
    %c0_39 = arith.constant 0 : index
    %38 = vector.load %arg7[%c96, %c0_39] : memref<216x896xf32, #tpu.memory_space<vmem>>, vector<8x896xf32>
    tpu.vector_store %arg7[%c96, %c0_39], %37 {strides = array<i32>} : memref<216x896xf32, #tpu.memory_space<vmem>>, vector<8x896xf32>,
    %c0_40 = arith.constant 0 : index
    %c0_41 = arith.constant 0 : index
    %c111 = arith.constant 111 : index
    %39 = vector.load %arg1[%c0_40, %c0_41, %c111] : memref<1x8x1152xf32, #tpu.memory_space<vmem>>, vector<1x8x896xf32>
    %40 = vector.shape_cast %39 : vector<1x8x896xf32> to vector<8x896xf32>
    %c104 = arith.constant 104 : index
    %c0_42 = arith.constant 0 : index
    %41 = vector.load %arg7[%c104, %c0_42] : memref<216x896xf32, #tpu.memory_space<vmem>>, vector<8x896xf32>
    tpu.vector_store %arg7[%c104, %c0_42], %40 {strides = array<i32>} : memref<216x896xf32, #tpu.memory_space<vmem>>, vector<8x896xf32>,
    %c0_43 = arith.constant 0 : index
    %c0_44 = arith.constant 0 : index
    %c112 = arith.constant 112 : index
    %42 = vector.load %arg1[%c0_43, %c0_44, %c112] : memref<1x8x1152xf32, #tpu.memory_space<vmem>>, vector<1x8x896xf32>
    %43 = vector.shape_cast %42 : vector<1x8x896xf32> to vector<8x896xf32>
    %c112_45 = arith.constant 112 : index
    %c0_46 = arith.constant 0 : index
    %44 = vector.load %arg7[%c112_45, %c0_46] : memref<216x896xf32, #tpu.memory_space<vmem>>, vector<8x896xf32>
    tpu.vector_store %arg7[%c112_45, %c0_46], %43 {strides = array<i32>} : memref<216x896xf32, #tpu.memory_space<vmem>>, vector<8x896xf32>,
    %c0_47 = arith.constant 0 : index
    %c0_48 = arith.constant 0 : index
    %c120 = arith.constant 120 : index
    %45 = vector.load %arg1[%c0_47, %c0_48, %c120] : memref<1x8x1152xf32, #tpu.memory_space<vmem>>, vector<1x8x896xf32>
    %46 = vector.shape_cast %45 : vector<1x8x896xf32> to vector<8x896xf32>
    %c120_49 = arith.constant 120 : index
    %c0_50 = arith.constant 0 : index
    %47 = vector.load %arg7[%c120_49, %c0_50] : memref<216x896xf32, #tpu.memory_space<vmem>>, vector<8x896xf32>
    tpu.vector_store %arg7[%c120_49, %c0_50], %46 {strides = array<i32>} : memref<216x896xf32, #tpu.memory_space<vmem>>, vector<8x896xf32>,
    %c0_51 = arith.constant 0 : index
    %c0_52 = arith.constant 0 : index
    %c121 = arith.constant 121 : index
    %48 = vector.load %arg1[%c0_51, %c0_52, %c121] : memref<1x8x1152xf32, #tpu.memory_space<vmem>>, vector<1x8x896xf32>
    %49 = vector.shape_cast %48 : vector<1x8x896xf32> to vector<8x896xf32>
    %c128 = arith.constant 128 : index
    %c0_53 = arith.constant 0 : index
    %50 = vector.load %arg7[%c128, %c0_53] : memref<216x896xf32, #tpu.memory_space<vmem>>, vector<8x896xf32>
    tpu.vector_store %arg7[%c128, %c0_53], %49 {strides = array<i32>} : memref<216x896xf32, #tpu.memory_space<vmem>>, vector<8x896xf32>,
    %c0_54 = arith.constant 0 : index
    %c0_55 = arith.constant 0 : index
    %c122 = arith.constant 122 : index
    %51 = vector.load %arg1[%c0_54, %c0_55, %c122] : memref<1x8x1152xf32, #tpu.memory_space<vmem>>, vector<1x8x896xf32>
    %52 = vector.shape_cast %51 : vector<1x8x896xf32> to vector<8x896xf32>
    %c136 = arith.constant 136 : index
    %c0_56 = arith.constant 0 : index
    %53 = vector.load %arg7[%c136, %c0_56] : memref<216x896xf32, #tpu.memory_space<vmem>>, vector<8x896xf32>
    tpu.vector_store %arg7[%c136, %c0_56], %52 {strides = array<i32>} : memref<216x896xf32, #tpu.memory_space<vmem>>, vector<8x896xf32>,
    %c0_57 = arith.constant 0 : index
    %c0_58 = arith.constant 0 : index
    %c200 = arith.constant 200 : index
    %54 = vector.load %arg1[%c0_57, %c0_58, %c200] : memref<1x8x1152xf32, #tpu.memory_space<vmem>>, vector<1x8x896xf32>
    %55 = vector.shape_cast %54 : vector<1x8x896xf32> to vector<8x896xf32>
    %c144 = arith.constant 144 : index
    %c0_59 = arith.constant 0 : index
    %56 = vector.load %arg7[%c144, %c0_59] : memref<216x896xf32, #tpu.memory_space<vmem>>, vector<8x896xf32>
    tpu.vector_store %arg7[%c144, %c0_59], %55 {strides = array<i32>} : memref<216x896xf32, #tpu.memory_space<vmem>>, vector<8x896xf32>,
    %c0_60 = arith.constant 0 : index
    %c0_61 = arith.constant 0 : index
    %c201 = arith.constant 201 : index
    %57 = vector.load %arg1[%c0_60, %c0_61, %c201] : memref<1x8x1152xf32, #tpu.memory_space<vmem>>, vector<1x8x896xf32>
    %58 = vector.shape_cast %57 : vector<1x8x896xf32> to vector<8x896xf32>
    %c152 = arith.constant 152 : index
    %c0_62 = arith.constant 0 : index
    %59 = vector.load %arg7[%c152, %c0_62] : memref<216x896xf32, #tpu.memory_space<vmem>>, vector<8x896xf32>
    tpu.vector_store %arg7[%c152, %c0_62], %58 {strides = array<i32>} : memref<216x896xf32, #tpu.memory_space<vmem>>, vector<8x896xf32>,
    %c0_63 = arith.constant 0 : index
    %c0_64 = arith.constant 0 : index
    %c202 = arith.constant 202 : index
    %60 = vector.load %arg1[%c0_63, %c0_64, %c202] : memref<1x8x1152xf32, #tpu.memory_space<vmem>>, vector<1x8x896xf32>
    %61 = vector.shape_cast %60 : vector<1x8x896xf32> to vector<8x896xf32>
    %c160 = arith.constant 160 : index
    %c0_65 = arith.constant 0 : index
    %62 = vector.load %arg7[%c160, %c0_65] : memref<216x896xf32, #tpu.memory_space<vmem>>, vector<8x896xf32>
    tpu.vector_store %arg7[%c160, %c0_65], %61 {strides = array<i32>} : memref<216x896xf32, #tpu.memory_space<vmem>>, vector<8x896xf32>,
    %c0_66 = arith.constant 0 : index
    %c0_67 = arith.constant 0 : index
    %c210 = arith.constant 210 : index
    %63 = vector.load %arg1[%c0_66, %c0_67, %c210] : memref<1x8x1152xf32, #tpu.memory_space<vmem>>, vector<1x8x896xf32>
    %64 = vector.shape_cast %63 : vector<1x8x896xf32> to vector<8x896xf32>
    %c168 = arith.constant 168 : index
    %c0_68 = arith.constant 0 : index
    %65 = vector.load %arg7[%c168, %c0_68] : memref<216x896xf32, #tpu.memory_space<vmem>>, vector<8x896xf32>
    tpu.vector_store %arg7[%c168, %c0_68], %64 {strides = array<i32>} : memref<216x896xf32, #tpu.memory_space<vmem>>, vector<8x896xf32>,
    %c0_69 = arith.constant 0 : index
    %c0_70 = arith.constant 0 : index
    %c211 = arith.constant 211 : index
    %66 = vector.load %arg1[%c0_69, %c0_70, %c211] : memref<1x8x1152xf32, #tpu.memory_space<vmem>>, vector<1x8x896xf32>
    %67 = vector.shape_cast %66 : vector<1x8x896xf32> to vector<8x896xf32>
    %c176 = arith.constant 176 : index
    %c0_71 = arith.constant 0 : index
    %68 = vector.load %arg7[%c176, %c0_71] : memref<216x896xf32, #tpu.memory_space<vmem>>, vector<8x896xf32>
    tpu.vector_store %arg7[%c176, %c0_71], %67 {strides = array<i32>} : memref<216x896xf32, #tpu.memory_space<vmem>>, vector<8x896xf32>,
    %c0_72 = arith.constant 0 : index
    %c0_73 = arith.constant 0 : index
    %c212 = arith.constant 212 : index
    %69 = vector.load %arg1[%c0_72, %c0_73, %c212] : memref<1x8x1152xf32, #tpu.memory_space<vmem>>, vector<1x8x896xf32>
    %70 = vector.shape_cast %69 : vector<1x8x896xf32> to vector<8x896xf32>
    %c184 = arith.constant 184 : index
    %c0_74 = arith.constant 0 : index
    %71 = vector.load %arg7[%c184, %c0_74] : memref<216x896xf32, #tpu.memory_space<vmem>>, vector<8x896xf32>
    tpu.vector_store %arg7[%c184, %c0_74], %70 {strides = array<i32>} : memref<216x896xf32, #tpu.memory_space<vmem>>, vector<8x896xf32>,
    %c0_75 = arith.constant 0 : index
    %c0_76 = arith.constant 0 : index
    %c220 = arith.constant 220 : index
    %72 = vector.load %arg1[%c0_75, %c0_76, %c220] : memref<1x8x1152xf32, #tpu.memory_space<vmem>>, vector<1x8x896xf32>
    %73 = vector.shape_cast %72 : vector<1x8x896xf32> to vector<8x896xf32>
    %c192 = arith.constant 192 : index
    %c0_77 = arith.constant 0 : index
    %74 = vector.load %arg7[%c192, %c0_77] : memref<216x896xf32, #tpu.memory_space<vmem>>, vector<8x896xf32>
    tpu.vector_store %arg7[%c192, %c0_77], %73 {strides = array<i32>} : memref<216x896xf32, #tpu.memory_space<vmem>>, vector<8x896xf32>,
    %c0_78 = arith.constant 0 : index
    %c0_79 = arith.constant 0 : index
    %c221 = arith.constant 221 : index
    %75 = vector.load %arg1[%c0_78, %c0_79, %c221] : memref<1x8x1152xf32, #tpu.memory_space<vmem>>, vector<1x8x896xf32>
    %76 = vector.shape_cast %75 : vector<1x8x896xf32> to vector<8x896xf32>
    %c200_80 = arith.constant 200 : index
    %c0_81 = arith.constant 0 : index
    %77 = vector.load %arg7[%c200_80, %c0_81] : memref<216x896xf32, #tpu.memory_space<vmem>>, vector<8x896xf32>
    tpu.vector_store %arg7[%c200_80, %c0_81], %76 {strides = array<i32>} : memref<216x896xf32, #tpu.memory_space<vmem>>, vector<8x896xf32>,
    %c0_82 = arith.constant 0 : index
    %c0_83 = arith.constant 0 : index
    %c222 = arith.constant 222 : index
    %78 = vector.load %arg1[%c0_82, %c0_83, %c222] : memref<1x8x1152xf32, #tpu.memory_space<vmem>>, vector<1x8x896xf32>
    %79 = vector.shape_cast %78 : vector<1x8x896xf32> to vector<8x896xf32>
    %c208 = arith.constant 208 : index
    %c0_84 = arith.constant 0 : index
    %80 = vector.load %arg7[%c208, %c0_84] : memref<216x896xf32, #tpu.memory_space<vmem>>, vector<8x896xf32>
    tpu.vector_store %arg7[%c208, %c0_84], %79 {strides = array<i32>} : memref<216x896xf32, #tpu.memory_space<vmem>>, vector<8x896xf32>,
    %c0_85 = arith.constant 0 : index
    %c0_86 = arith.constant 0 : index
    %81 = vector.load %arg7[%c0_85, %c0_86] : memref<216x896xf32, #tpu.memory_space<vmem>>, vector<216x896xf32>
    %82 = arith.truncf %81 : vector<216x896xf32> to vector<216x896xbf16>
    %c0_87 = arith.constant 0 : index
    %c0_88 = arith.constant 0 : index
    %83 = vector.load %arg2[%c0_87, %c0_88] : memref<8x216xbf16, #tpu.memory_space<vmem>>, vector<8x216xbf16>
    %cst = arith.constant dense<0.000000e+00> : vector<8x896xf32>
    %84 = tpu.matmul %83, %82, %cst {dimension_numbers = #tpu.dot_dimension_numbers<[1], [0], [0], [1], [0, 0, 1, 1], [], []>} : vector<8x216xbf16>, vector<216x896xbf16>, vector<8x896xf32> -> vector<8x896xf32>
    %c0_89 = arith.constant 0 : index
    %c0_90 = arith.constant 0 : index
    %85 = vector.load %arg3[%c0_89, %c0_90] : memref<1x896xf32, #tpu.memory_space<vmem>>, vector<1x896xf32>
    %86 = vector.broadcast %85 : vector<1x896xf32> to vector<8x896xf32>
    %87 = arith.mulf %84, %86 : vector<8x896xf32>
    %cst_91 = arith.constant dense<0.000000e+00> : vector<8xf32>
    %88 = vector.multi_reduction <add>, %87, %cst_91 [1] : vector<8x896xf32> to vector<8xf32>
    %89 = vector.shape_cast %88 : vector<8xf32> to vector<8x1xf32>
    %cst_92 = arith.constant 0.001953125 : f32
    %90 = vector.broadcast %cst_92 : f32 to vector<8x1xf32>
    %91 = arith.mulf %89, %90 : vector<8x1xf32>
    %92 = vector.broadcast %91 : vector<8x1xf32> to vector<8x896xf32>
    %93 = arith.subf %84, %92 : vector<8x896xf32>
    %94 = vector.broadcast %85 : vector<1x896xf32> to vector<8x896xf32>
    %95 = arith.mulf %93, %94 : vector<8x896xf32>
    %96 = arith.mulf %95, %95 : vector<8x896xf32>
    %cst_93 = arith.constant dense<0.000000e+00> : vector<8xf32>
    %97 = vector.multi_reduction <add>, %96, %cst_93 [1] : vector<8x896xf32> to vector<8xf32>
    %98 = vector.shape_cast %97 : vector<8xf32> to vector<8x1xf32>
    %cst_94 = arith.constant 0.001953125 : f32
    %99 = vector.broadcast %cst_94 : f32 to vector<8x1xf32>
    %100 = arith.mulf %98, %99 : vector<8x1xf32>
    %c0_95 = arith.constant 0 : index
    %c0_96 = arith.constant 0 : index
    %101 = vector.load %arg4[%c0_95, %c0_96] : memref<8x1xf32, #tpu.memory_space<vmem>>, vector<8x1xf32>
    %cst_97 = arith.constant 9.99999974E-6 : f32
    %102 = vector.broadcast %cst_97 : f32 to vector<8x1xf32>
    %103 = arith.addf %100, %102 : vector<8x1xf32>
    %104 = math.rsqrt %103 : vector<8x1xf32>
    %105 = arith.mulf %101, %104 : vector<8x1xf32>
    %106 = vector.broadcast %91 : vector<8x1xf32> to vector<8x896xf32>
    %107 = arith.subf %84, %106 : vector<8x896xf32>
    %108 = vector.broadcast %105 : vector<8x1xf32> to vector<8x896xf32>
    %109 = arith.mulf %107, %108 : vector<8x896xf32>
    %c0_98 = arith.constant 0 : index
    %c0_99 = arith.constant 0 : index
    %110 = vector.load %arg5[%c0_98, %c0_99] : memref<8x1xf32, #tpu.memory_space<vmem>>, vector<8x1xf32>
    %111 = vector.broadcast %110 : vector<8x1xf32> to vector<8x896xf32>
    %112 = arith.addf %109, %111 : vector<8x896xf32>
    %cst_100 = arith.constant 0.000000e+00 : f32
    %113 = vector.broadcast %cst_100 : f32 to vector<8x896xf32>
    %114 = arith.cmpf oge, %112, %113 : vector<8x896xf32>
    %cst_101 = arith.constant 0.229166672 : f32
    %115 = vector.broadcast %cst_101 : f32 to vector<8x896xf32>
    %116 = arith.mulf %112, %115 : vector<8x896xf32>
    %117 = arith.select %114, %112, %116 : vector<8x896xi1>, vector<8x896xf32>
    %c0_102 = arith.constant 0 : index
    %c0_103 = arith.constant 0 : index
    %c0_104 = arith.constant 0 : index
    %118 = vector.load %arg6[%c0_102, %c0_103, %c0_104] : memref<1x8x896xf32, #tpu.memory_space<vmem>>, vector<1x8x896xf32>
    %119 = vector.shape_cast %118 : vector<1x8x896xf32> to vector<8x896xf32>
    %120 = vector.shape_cast %117 : vector<8x896xf32> to vector<1x8x896xf32>
    tpu.vector_store %arg6[%c0_102, %c0_103, %c0_104], %120 {strides = array<i32>} : memref<1x8x896xf32, #tpu.memory_space<vmem>>, vector<1x8x896xf32>,
    return
  }
  func.func @transform_0(%arg0: i32) -> (i32, i32, i32) {
    %c0_i32 = arith.constant 0 : i32
    %c0_i32_0 = arith.constant 0 : i32
    %c0_i32_1 = arith.constant 0 : i32
    return %arg0, %c0_i32, %c0_i32_0 : i32, i32, i32
  }
  func.func @transform_1(%arg0: i32) -> (i32, i32) {
    %c0_i32 = arith.constant 0 : i32
    %c0_i32_0 = arith.constant 0 : i32
    %c0_i32_1 = arith.constant 0 : i32
    return %c0_i32, %c0_i32_0 : i32, i32
  }
  func.func @transform_2(%arg0: i32) -> (i32, i32) {
    %c0_i32 = arith.constant 0 : i32
    %c0_i32_0 = arith.constant 0 : i32
    %c0_i32_1 = arith.constant 0 : i32
    return %c0_i32, %c0_i32_0 : i32, i32
  }
  func.func @transform_3(%arg0: i32) -> (i32, i32) {
    %c0_i32 = arith.constant 0 : i32
    %c0_i32_0 = arith.constant 0 : i32
    %c0_i32_1 = arith.constant 0 : i32
    return %c0_i32, %c0_i32_0 : i32, i32
  }
  func.func @transform_4(%arg0: i32) -> (i32, i32) {
    %c0_i32 = arith.constant 0 : i32
    %c0_i32_0 = arith.constant 0 : i32
    %c0_i32_1 = arith.constant 0 : i32
    return %c0_i32, %c0_i32_0 : i32, i32
  }
  func.func @transform_5(%arg0: i32) -> (i32, i32, i32) {
    %c0_i32 = arith.constant 0 : i32
    %c0_i32_0 = arith.constant 0 : i32
    %c0_i32_1 = arith.constant 0 : i32
    return %arg0, %c0_i32, %c0_i32_0 : i32, i32, i32
  }
}

</mosaic_0001>

<llo_original>
// kernel: tpu_custom_call.1
$region0: #{tpu_custom_call.1}
  #allocation0 [shape = 'u32[]', space=smem, size = 0x4, offset = 0x4, fixed_abs, tag = 'smem constant byte address 0x4 - core index']
  #allocation1 [shape = 'u32[144,128]{1,0:T(1,128)}', space=vmem, size = 0x12000, scoped, tag = 'internal scratch']
  #allocation2 [shape = 'f32[216,896]{1,0:T(8,128)}', space=vmem, size = 0xbd000, scoped, tag = 'scratch operand']
  %s0 = inlined_call_operand.hbm [shape: f32[2,8,1152], index: 0, kind: input, shape index: {}]
  %s1 = inlined_call_operand.vmem [shape: bf16[8,216], index: 1, kind: input, shape index: {}]
  %s2 = inlined_call_operand.vmem [shape: f32[1,896], index: 2, kind: input, shape index: {}]
  %s3 = inlined_call_operand.vmem [shape: f32[8,1], index: 3, kind: input, shape index: {}]
  %s4 = inlined_call_operand.vmem [shape: f32[8,1], index: 4, kind: input, shape index: {}]
  %s5 = inlined_call_operand.hbm [shape: f32[2,8,896], index: 5, kind: output, shape index: {}]
  %s6 = sld [smem:[#allocation0]]
  $region57: #{tpu_custom_call.1} parent=0
    _
  %s8 = ssub.s32 1, %s6
  %s9 = scalar_select 0, %s8, %s6
  $region1: #{tpu_custom_call.1} parent=0
    #allocation3 [shape = 'u8[73728]{0}', space=vmem, size = 0x12000, scoped, tag = 'input window, operand 0']
    #allocation4 [shape = 's32[2]{0}', space=sflag, size = 0x8, scoped, tag = 'scoped memory for tpu_custom_call.1']
    #allocation5 [shape = 's32[2]{0}', space=sflag, size = 0x8, scoped, tag = 'scoped memory for tpu_custom_call.1']
    #allocation6 [shape = 'u8[57344]{0}', space=vmem, size = 0xe000, scoped, tag = 'output window, operand 0']
    %10 = vsyncpa [#allocation4], 0
    %s11 = scalar_lea.sflag [#allocation4], 1
    %12 = vsyncpa %s11, 0
    %13 = vsyncpa [#allocation5], 0
    %s14 = scalar_lea.sflag [#allocation5], 1
    %15 = vsyncpa %s14, 0
    loop: start=0, step=1, limit=4
    $region2: #{tpu_custom_call.1} parent=1 // loop_pre_header
      _
    $region3: #{tpu_custom_call.1} parent=1 // loop_header
      %s17 = sphi 0, %s21
      %p18 = scmp.ge.s32.totalorder %s17, 4
      %s27 = sphi 0, %s29
      %s30 = sphi 0, %s27
      %s31 = sphi 0, %s30
      %s47 = sphi 0, %s31
      %s51 = sphi 0, %s51
      %s53 = sphi 0, %s51
      %s54 = sphi 0, %s53
      %s68 = sphi 0, %s54
      %s72 = sphi 0, %s72
      %s74 = sphi 0, %s72
      %s75 = sphi 0, %s74
      %s89 = sphi 0, %s75
      %s93 = sphi 0, %s93
      %s95 = sphi 0, %s93
      %s96 = sphi 0, %s95
      %s110 = sphi 0, %s96
      %s114 = sphi 0, %s114
      %s116 = sphi 0, %s114
      %s117 = sphi 0, %s116
      %s131 = sphi 0, %s117
      %s137 = sphi 0, %s139
      %s140 = sphi 0, %s137
      %s141 = sphi 0, %s140
      %s157 = sphi 0, %s141
    $region4: #{tpu_custom_call.1} parent=1 // loop_header_branch
      %20 = sbr.rel (%p18) target = $region8
    $region5: #{tpu_custom_call.1} parent=1 // loop_body
      %s22 = ssub.s32 %s17, 1
      %s23 = ssub.s32 %s17, 2
      %s24 = sadd.s32 %s17, 1
      %s25 = ssub.s32 %s17, %s24
      %p26 = scmp.eq.s32.totalorder %s25, 0
      %s28 = sadd.s32 %s27, 1
      %s29 = scalar_select %p26, %s27, %s28
      %p32 = pneg %p26
      %p33 = scmp.eq.s32.totalorder %s17, 1
      %p34 = por %p32, %p33
      %p35 = scmp.ne.s32.totalorder %s27, %s30
      %p36 = scmp.eq.s32.totalorder %s17, 0
      %p37 = por %p35, %p36
      %p38 = scmp.ne.s32.totalorder %s27, %s30
      %p39 = scmp.eq.s32.totalorder %s22, 1
      %p40 = por %p38, %p39
      %p41 = scmp.ne.s32.totalorder %s30, %s31
      %p42 = scmp.eq.s32.totalorder %s22, 0
      %p43 = por %p41, %p42
      %p44 = scmp.ne.s32.totalorder %s30, %s31
      %p45 = scmp.eq.s32.totalorder %s23, 1
      %p46 = por %p44, %p45
      %p48 = scmp.ne.s32.totalorder %s31, %s47
      %p49 = scmp.eq.s32.totalorder %s23, 0
      %p50 = por %p48, %p49
      %s52 = sadd.s32 %s51, 1
      %p55 = scmp.eq.s32.totalorder %s17, 1
      %p56 = scmp.ne.s32.totalorder %s51, %s53
      %p57 = scmp.eq.s32.totalorder %s17, 0
      %p58 = por %p56, %p57
      %p59 = scmp.ne.s32.totalorder %s51, %s53
      %p60 = scmp.eq.s32.totalorder %s22, 1
      %p61 = por %p59, %p60
      %p62 = scmp.ne.s32.totalorder %s53, %s54
      %p63 = scmp.eq.s32.totalorder %s22, 0
      %p64 = por %p62, %p63
      %p65 = scmp.ne.s32.totalorder %s53, %s54
      %p66 = scmp.eq.s32.totalorder %s23, 1
      %p67 = por %p65, %p66
      %p69 = scmp.ne.s32.totalorder %s54, %s68
      %p70 = scmp.eq.s32.totalorder %s23, 0
      %p71 = por %p69, %p70
      %s73 = sadd.s32 %s72, 1
      %p76 = scmp.eq.s32.totalorder %s17, 1
      %p77 = scmp.ne.s32.totalorder %s72, %s74
      %p78 = scmp.eq.s32.totalorder %s17, 0
      %p79 = por %p77, %p78
      %p80 = scmp.ne.s32.totalorder %s72, %s74
      %p81 = scmp.eq.s32.totalorder %s22, 1
      %p82 = por %p80, %p81
      %p83 = scmp.ne.s32.totalorder %s74, %s75
      %p84 = scmp.eq.s32.totalorder %s22, 0
      %p85 = por %p83, %p84
      %p86 = scmp.ne.s32.totalorder %s74, %s75
      %p87 = scmp.eq.s32.totalorder %s23, 1
      %p88 = por %p86, %p87
      %p90 = scmp.ne.s32.totalorder %s75, %s89
      %p91 = scmp.eq.s32.totalorder %s23, 0
      %p92 = por %p90, %p91
      %s94 = sadd.s32 %s93, 1
      %p97 = scmp.eq.s32.totalorder %s17, 1
      %p98 = scmp.ne.s32.totalorder %s93, %s95
      %p99 = scmp.eq.s32.totalorder %s17, 0
      %p100 = por %p98, %p99
      %p101 = scmp.ne.s32.totalorder %s93, %s95
      %p102 = scmp.eq.s32.totalorder %s22, 1
      %p103 = por %p101, %p102
      %p104 = scmp.ne.s32.totalorder %s95, %s96
      %p105 = scmp.eq.s32.totalorder %s22, 0
      %p106 = por %p104, %p105
      %p107 = scmp.ne.s32.totalorder %s95, %s96
      %p108 = scmp.eq.s32.totalorder %s23, 1
      %p109 = por %p107, %p108
      %p111 = scmp.ne.s32.totalorder %s96, %s110
      %p112 = scmp.eq.s32.totalorder %s23, 0
      %p113 = por %p111, %p112
      %s115 = sadd.s32 %s114, 1
      %p118 = scmp.eq.s32.totalorder %s17, 1
      %p119 = scmp.ne.s32.totalorder %s114, %s116
      %p120 = scmp.eq.s32.totalorder %s17, 0
      %p121 = por %p119, %p120
      %p122 = scmp.ne.s32.totalorder %s114, %s116
      %p123 = scmp.eq.s32.totalorder %s22, 1
      %p124 = por %p122, %p123
      %p125 = scmp.ne.s32.totalorder %s116, %s117
      %p126 = scmp.eq.s32.totalorder %s22, 0
      %p127 = por %p125, %p126
      %p128 = scmp.ne.s32.totalorder %s116, %s117
      %p129 = scmp.eq.s32.totalorder %s23, 1
      %p130 = por %p128, %p129
      %p132 = scmp.ne.s32.totalorder %s117, %s131
      %p133 = scmp.eq.s32.totalorder %s23, 0
      %p134 = por %p132, %p133
      %s135 = ssub.s32 %s17, %s24
      %p136 = scmp.eq.s32.totalorder %s135, 0
      %s138 = sadd.s32 %s137, 1
      %s139 = scalar_select %p136, %s137, %s138
      %p142 = pneg %p136
      %p143 = scmp.eq.s32.totalorder %s17, 1
      %p144 = por %p142, %p143
      %p145 = scmp.ne.s32.totalorder %s137, %s140
      %p146 = scmp.eq.s32.totalorder %s17, 0
      %p147 = por %p145, %p146
      %p148 = scmp.ne.s32.totalorder %s137, %s140
      %p149 = scmp.eq.s32.totalorder %s22, 1
      %p150 = por %p148, %p149
      %p151 = scmp.ne.s32.totalorder %s140, %s141
      %p152 = scmp.eq.s32.totalorder %s22, 0
      %p153 = por %p151, %p152
      %p154 = scmp.ne.s32.totalorder %s140, %s141
      %p155 = scmp.eq.s32.totalorder %s23, 1
      %p156 = por %p154, %p155
      %p158 = scmp.ne.s32.totalorder %s141, %s157
      %p159 = scmp.eq.s32.totalorder %s23, 0
      %p160 = por %p158, %p159
      %p161 = scmp.le.s32.totalorder 1, %s17
      %p162 = scmp.lt.s32.totalorder %s17, 3
      %p163 = pnand %p161, %p162
      %p164 = pneg %p163
      // Predicated region
      $region9: #{tpu_custom_call.1} parent=5 // pred_check
        _
      $region10: #{tpu_custom_call.1} parent=5 // pred_check_branch
        %166 = sbr.rel (%p163) target = $region12
      $region11: #{tpu_custom_call.1} parent=5 // pred_region
        %s167 = ssub.s32 %s17, 1
        // Predicated region
        $region13: #{tpu_custom_call.1} parent=11 // pred_check
          %p168 = pneg %p64
        $region14: #{tpu_custom_call.1} parent=11 // pred_check_branch
          %170 = sbr.rel (%p168) target = $region16
        $region15: #{tpu_custom_call.1} parent=11 // pred_region
          _
        $region16: #{tpu_custom_call.1} parent=11 // pred_fallthru
          _
        // Predicated region
        $region17: #{tpu_custom_call.1} parent=11 // pred_check
          %p171 = pneg %p85
        $region18: #{tpu_custom_call.1} parent=11 // pred_check_branch
          %173 = sbr.rel (%p171) target = $region20
        $region19: #{tpu_custom_call.1} parent=11 // pred_region
          _
        $region20: #{tpu_custom_call.1} parent=11 // pred_fallthru
          _
        // Predicated region
        $region21: #{tpu_custom_call.1} parent=11 // pred_check
          %p174 = pneg %p106
        $region22: #{tpu_custom_call.1} parent=11 // pred_check_branch
          %176 = sbr.rel (%p174) target = $region24
        $region23: #{tpu_custom_call.1} parent=11 // pred_region
          _
        $region24: #{tpu_custom_call.1} parent=11 // pred_fallthru
          _
        // Predicated region
        $region25: #{tpu_custom_call.1} parent=11 // pred_check
          %p177 = pneg %p127
        $region26: #{tpu_custom_call.1} parent=11 // pred_check_branch
          %179 = sbr.rel (%p177) target = $region28
        $region27: #{tpu_custom_call.1} parent=11 // pred_region
          _
        $region28: #{tpu_custom_call.1} parent=11 // pred_fallthru
          _
      $region12: #{tpu_custom_call.1} parent=5 // pred_fallthru
        _
      %p180 = scmp.lt.s32.totalorder %s17, 2
      // Predicated region
      $region29: #{tpu_custom_call.1} parent=5 // pred_check
        %p181 = pneg %p180
      $region30: #{tpu_custom_call.1} parent=5 // pred_check_branch
        %183 = sbr.rel (%p181) target = $region32
      $region31: #{tpu_custom_call.1} parent=5 // pred_region
        // Predicated region
        $region33: #{tpu_custom_call.1} parent=31 // pred_check
          %p184 = pneg %p37
        $region34: #{tpu_custom_call.1} parent=31 // pred_check_branch
          %186 = sbr.rel (%p184) target = $region36
        $region35: #{tpu_custom_call.1} parent=31 // pred_region
          %s187 = sand.u32 %s27, 1
          %s188 = scalar_lea.sflag [#allocation4], %s187
          %s189 = sand.u32 %s27, 1
          %s190 = smul.addr %s189, 72
          %s191 = scalar_lea.vmem [#allocation3], %s190
          %s193 = ssub.s32 1152, 1152
          %194 = vsyncadd %s188, %s193
          %s195 = smul.addr %s17, 9
          %s196 = smul.addr %s195, 128
          %s197 = scalar_lea.hbm %s0, %s196
          %s199 = sshll.u32 %s191, 4
          %s200 = int_to_ptr.vmem [resolvable:$true] %s199
          %202 = dma.hbm_to_vmem [thread:$0]  %s197, 1152, %s200, %s188
        $region36: #{tpu_custom_call.1} parent=31 // pred_fallthru
          _
      $region32: #{tpu_custom_call.1} parent=5 // pred_fallthru
        _
      %p203 = scmp.le.s32.totalorder 1, %s17
      %p204 = scmp.lt.s32.totalorder %s17, 3
      %p205 = pnand %p203, %p204
      %p206 = pneg %p205
      // Predicated region
      $region37: #{tpu_custom_call.1} parent=5 // pred_check
        _
      $region38: #{tpu_custom_call.1} parent=5 // pred_check_branch
        %208 = sbr.rel (%p205) target = $region40
      $region39: #{tpu_custom_call.1} parent=5 // pred_region
        %s209 = ssub.s32 %s17, 1
        %s210 = sand.u32 %s30, 1
        %s211 = scalar_lea.sflag [#allocation4], %s210
        %s212 = sand.u32 %s30, 1
        %s213 = smul.addr %s212, 72
        %s214 = scalar_lea.vmem [#allocation3], %s213
        // Predicated region
        $region41: #{tpu_custom_call.1} parent=39 // pred_check
          %p215 = pneg %p43
        $region42: #{tpu_custom_call.1} parent=39 // pred_check_branch
          %217 = sbr.rel (%p215) target = $region44
        $region43: #{tpu_custom_call.1} parent=39 // pred_region
          %218 = dma.done %s211, 1152
        $region44: #{tpu_custom_call.1} parent=39 // pred_fallthru
          _
        %s219 = sand.u32 %s30, 1
        %s220 = scalar_lea.sflag [#allocation4], %s219
        %s221 = sand.u32 %s30, 1
        %s222 = smul.addr %s221, 72
        %s223 = scalar_lea.vmem [#allocation3], %s222
        %p224 = pneg %p43
        %p225 = pneg %p40
        %p226 = pneg %p64
        %p227 = pneg %p61
        %p228 = pneg %p85
        %p229 = pneg %p82
        %p230 = pneg %p106
        %p231 = pneg %p103
        %p232 = pneg %p127
        %p233 = pneg %p124
        %p234 = pneg %p153
        %p235 = pneg %p150
        %s236 = sand.u32 %s140, 1
        %s237 = scalar_lea.sflag [#allocation5], %s236
        %s238 = sand.u32 %s140, 1
        %s239 = smul.addr %s238, 56
        %s240 = scalar_lea.vmem [#allocation6], %s239
        %v242 = vld [vmem:[%s214] sm:$0xff]
        %v243 = vld [vmem:[%s214 + $0x8] sm:$0xff]
        %v244 = vld [vmem:[%s214 + $0x10] sm:$0xff]
        %v245 = vld [vmem:[%s214 + $0x18] sm:$0xff]
        %v246 = vld [vmem:[%s214 + $0x20] sm:$0xff]
        %v247 = vld [vmem:[%s214 + $0x28] sm:$0xff]
        %v248 = vld [vmem:[%s214 + $0x30] sm:$0xff]
        %249 = vst [vmem:[#allocation2] sm:$0xff] %v242
        %250 = vst [vmem:[#allocation2 + $0x8] sm:$0xff] %v243
        %251 = vst [vmem:[#allocation2 + $0x10] sm:$0xff] %v244
        %252 = vst [vmem:[#allocation2 + $0x18] sm:$0xff] %v245
        %253 = vst [vmem:[#allocation2 + $0x20] sm:$0xff] %v246
        %254 = vst [vmem:[#allocation2 + $0x28] sm:$0xff] %v247
        %255 = vst [vmem:[#allocation2 + $0x30] sm:$0xff] %v248
        %v256 = vld [vmem:[%s214] sm:$0xff]
        %v257 = vld [vmem:[%s214 + $0x8] sm:$0xff]
        %v258 = vld [vmem:[%s214 + $0x10] sm:$0xff]
        %v259 = vld [vmem:[%s214 + $0x18] sm:$0xff]
        %v260 = vld [vmem:[%s214 + $0x20] sm:$0xff]
        %v261 = vld [vmem:[%s214 + $0x28] sm:$0xff]
        %v262 = vld [vmem:[%s214 + $0x30] sm:$0xff]
        %v263 = vld [vmem:[%s214 + $0x38] sm:$0xff]
        %272 = vrot.lane.b32.xlu0 %v256, 127
        %v273 = vpop.permute.xlu0 %272
        %274 = vrot.lane.b32.xlu0 %v257, 127
        %v275 = vpop.permute.xlu0 %274
        %276 = vrot.lane.b32.xlu0 %v258, 127
        %v277 = vpop.permute.xlu0 %276
        %278 = vrot.lane.b32.xlu0 %v259, 127
        %v279 = vpop.permute.xlu0 %278
        %280 = vrot.lane.b32.xlu0 %v260, 127
        %v281 = vpop.permute.xlu0 %280
        %282 = vrot.lane.b32.xlu0 %v261, 127
        %v283 = vpop.permute.xlu0 %282
        %284 = vrot.lane.b32.xlu0 %v262, 127
        %v285 = vpop.permute.xlu0 %284
        %286 = vrot.lane.b32.xlu0 %v263, 127
        %v287 = vpop.permute.xlu0 %286
        %vm288 = vcmask 1039360
        %v289 = vsel %vm288, %v273, %v275
        %v290 = vsel %vm288, %v275, %v277
        %v291 = vsel %vm288, %v277, %v279
        %v292 = vsel %vm288, %v279, %v281
        %v293 = vsel %vm288, %v281, %v283
        %v294 = vsel %vm288, %v283, %v285
        %v295 = vsel %vm288, %v285, %v287
        %303 = vst [vmem:[#allocation2 + $0x38] sm:$0xff] %v289
        %304 = vst [vmem:[#allocation2 + $0x40] sm:$0xff] %v290
        %305 = vst [vmem:[#allocation2 + $0x48] sm:$0xff] %v291
        %306 = vst [vmem:[#allocation2 + $0x50] sm:$0xff] %v292
        %307 = vst [vmem:[#allocation2 + $0x58] sm:$0xff] %v293
        %308 = vst [vmem:[#allocation2 + $0x60] sm:$0xff] %v294
        %309 = vst [vmem:[#allocation2 + $0x68] sm:$0xff] %v295
        %v310 = vld [vmem:[%s214] sm:$0xff]
        %v311 = vld [vmem:[%s214 + $0x8] sm:$0xff]
        %v312 = vld [vmem:[%s214 + $0x10] sm:$0xff]
        %v313 = vld [vmem:[%s214 + $0x18] sm:$0xff]
        %v314 = vld [vmem:[%s214 + $0x20] sm:$0xff]
        %v315 = vld [vmem:[%s214 + $0x28] sm:$0xff]
        %v316 = vld [vmem:[%s214 + $0x30] sm:$0xff]
        %v317 = vld [vmem:[%s214 + $0x38] sm:$0xff]
        %326 = vrot.lane.b32.xlu0 %v310, 126
        %v327 = vpop.permute.xlu0 %326
        %328 = vrot.lane.b32.xlu0 %v311, 126
        %v329 = vpop.permute.xlu0 %328
        %330 = vrot.lane.b32.xlu0 %v312, 126
        %v331 = vpop.permute.xlu0 %330
        %332 = vrot.lane.b32.xlu0 %v313, 126
        %v333 = vpop.permute.xlu0 %332
        %334 = vrot.lane.b32.xlu0 %v314, 126
        %v335 = vpop.permute.xlu0 %334
        %336 = vrot.lane.b32.xlu0 %v315, 126
        %v337 = vpop.permute.xlu0 %336
        %338 = vrot.lane.b32.xlu0 %v316, 126
        %v339 = vpop.permute.xlu0 %338
        %340 = vrot.lane.b32.xlu0 %v317, 126
        %v341 = vpop.permute.xlu0 %340
        %vm342 = vcmask 1031168
        %v343 = vsel %vm342, %v327, %v329
        %v344 = vsel %vm342, %v329, %v331
        %v345 = vsel %vm342, %v331, %v333
        %v346 = vsel %vm342, %v333, %v335
        %v347 = vsel %vm342, %v335, %v337
        %v348 = vsel %vm342, %v337, %v339
        %v349 = vsel %vm342, %v339, %v341
        %357 = vst [vmem:[#allocation2 + $0x70] sm:$0xff] %v343
        %358 = vst [vmem:[#allocation2 + $0x78] sm:$0xff] %v344
        %359 = vst [vmem:[#allocation2 + $0x80] sm:$0xff] %v345
        %360 = vst [vmem:[#allocation2 + $0x88] sm:$0xff] %v346
        %361 = vst [vmem:[#allocation2 + $0x90] sm:$0xff] %v347
        %362 = vst [vmem:[#allocation2 + $0x98] sm:$0xff] %v348
        %363 = vst [vmem:[#allocation2 + $0xa0] sm:$0xff] %v349
        %v364 = vld [vmem:[%s214] sm:$0xff]
        %v365 = vld [vmem:[%s214 + $0x8] sm:$0xff]
        %v366 = vld [vmem:[%s214 + $0x10] sm:$0xff]
        %v367 = vld [vmem:[%s214 + $0x18] sm:$0xff]
        %v368 = vld [vmem:[%s214 + $0x20] sm:$0xff]
        %v369 = vld [vmem:[%s214 + $0x28] sm:$0xff]
        %v370 = vld [vmem:[%s214 + $0x30] sm:$0xff]
        %v371 = vld [vmem:[%s214 + $0x38] sm:$0xff]
        %380 = vrot.lane.b32.xlu0 %v364, 118
        %v381 = vpop.permute.xlu0 %380
        %382 = vrot.lane.b32.xlu0 %v365, 118
        %v383 = vpop.permute.xlu0 %382
        %384 = vrot.lane.b32.xlu0 %v366, 118
        %v385 = vpop.permute.xlu0 %384
        %386 = vrot.lane.b32.xlu0 %v367, 118
        %v387 = vpop.permute.xlu0 %386
        %388 = vrot.lane.b32.xlu0 %v368, 118
        %v389 = vpop.permute.xlu0 %388
        %390 = vrot.lane.b32.xlu0 %v369, 118
        %v391 = vpop.permute.xlu0 %390
        %392 = vrot.lane.b32.xlu0 %v370, 118
        %v393 = vpop.permute.xlu0 %392
        %394 = vrot.lane.b32.xlu0 %v371, 118
        %v395 = vpop.permute.xlu0 %394
        %vm396 = vcmask 965632
        %v397 = vsel %vm396, %v381, %v383
        %v398 = vsel %vm396, %v383, %v385
        %v399 = vsel %vm396, %v385, %v387
        %v400 = vsel %vm396, %v387, %v389
        %v401 = vsel %vm396, %v389, %v391
        %v402 = vsel %vm396, %v391, %v393
        %v403 = vsel %vm396, %v393, %v395
        %411 = vst [vmem:[#allocation2 + $0xa8] sm:$0xff] %v397
        %412 = vst [vmem:[#allocation2 + $0xb0] sm:$0xff] %v398
        %413 = vst [vmem:[#allocation2 + $0xb8] sm:$0xff] %v399
        %414 = vst [vmem:[#allocation2 + $0xc0] sm:$0xff] %v400
        %415 = vst [vmem:[#allocation2 + $0xc8] sm:$0xff] %v401
        %416 = vst [vmem:[#allocation2 + $0xd0] sm:$0xff] %v402
        %417 = vst [vmem:[#allocation2 + $0xd8] sm:$0xff] %v403
        %v418 = vld [vmem:[%s214] sm:$0xff]
        %v419 = vld [vmem:[%s214 + $0x8] sm:$0xff]
        %v420 = vld [vmem:[%s214 + $0x10] sm:$0xff]
        %v421 = vld [vmem:[%s214 + $0x18] sm:$0xff]
        %v422 = vld [vmem:[%s214 + $0x20] sm:$0xff]
        %v423 = vld [vmem:[%s214 + $0x28] sm:$0xff]
        %v424 = vld [vmem:[%s214 + $0x30] sm:$0xff]
        %v425 = vld [vmem:[%s214 + $0x38] sm:$0xff]
        %434 = vrot.lane.b32.xlu0 %v418, 117
        %v435 = vpop.permute.xlu0 %434
        %436 = vrot.lane.b32.xlu0 %v419, 117
        %v437 = vpop.permute.xlu0 %436
        %438 = vrot.lane.b32.xlu0 %v420, 117
        %v439 = vpop.permute.xlu0 %438
        %440 = vrot.lane.b32.xlu0 %v421, 117
        %v441 = vpop.permute.xlu0 %440
        %442 = vrot.lane.b32.xlu0 %v422, 117
        %v443 = vpop.permute.xlu0 %442
        %444 = vrot.lane.b32.xlu0 %v423, 117
        %v445 = vpop.permute.xlu0 %444
        %446 = vrot.lane.b32.xlu0 %v424, 117
        %v447 = vpop.permute.xlu0 %446
        %448 = vrot.lane.b32.xlu0 %v425, 117
        %v449 = vpop.permute.xlu0 %448
        %vm450 = vcmask 957440
        %v451 = vsel %vm450, %v435, %v437
        %v452 = vsel %vm450, %v437, %v439
        %v453 = vsel %vm450, %v439, %v441
        %v454 = vsel %vm450, %v441, %v443
        %v455 = vsel %vm450, %v443, %v445
        %v456 = vsel %vm450, %v445, %v447
        %v457 = vsel %vm450, %v447, %v449
        %465 = vst [vmem:[#allocation2 + $0xe0] sm:$0xff] %v451
        %466 = vst [vmem:[#allocation2 + $0xe8] sm:$0xff] %v452
        %467 = vst [vmem:[#allocation2 + $0xf0] sm:$0xff] %v453
        %468 = vst [vmem:[#allocation2 + $0xf8] sm:$0xff] %v454
        %469 = vst [vmem:[#allocation2 + $0x100] sm:$0xff] %v455
        %470 = vst [vmem:[#allocation2 + $0x108] sm:$0xff] %v456
        %471 = vst [vmem:[#allocation2 + $0x110] sm:$0xff] %v457
        %v472 = vld [vmem:[%s214] sm:$0xff]
        %v473 = vld [vmem:[%s214 + $0x8] sm:$0xff]
        %v474 = vld [vmem:[%s214 + $0x10] sm:$0xff]
        %v475 = vld [vmem:[%s214 + $0x18] sm:$0xff]
        %v476 = vld [vmem:[%s214 + $0x20] sm:$0xff]
        %v477 = vld [vmem:[%s214 + $0x28] sm:$0xff]
        %v478 = vld [vmem:[%s214 + $0x30] sm:$0xff]
        %v479 = vld [vmem:[%s214 + $0x38] sm:$0xff]
        %488 = vrot.lane.b32.xlu0 %v472, 116
        %v489 = vpop.permute.xlu0 %488
        %490 = vrot.lane.b32.xlu0 %v473, 116
        %v491 = vpop.permute.xlu0 %490
        %492 = vrot.lane.b32.xlu0 %v474, 116
        %v493 = vpop.permute.xlu0 %492
        %494 = vrot.lane.b32.xlu0 %v475, 116
        %v495 = vpop.permute.xlu0 %494
        %496 = vrot.lane.b32.xlu0 %v476, 116
        %v497 = vpop.permute.xlu0 %496
        %498 = vrot.lane.b32.xlu0 %v477, 116
        %v499 = vpop.permute.xlu0 %498
        %500 = vrot.lane.b32.xlu0 %v478, 116
        %v501 = vpop.permute.xlu0 %500
        %502 = vrot.lane.b32.xlu0 %v479, 116
        %v503 = vpop.permute.xlu0 %502
        %vm504 = vcmask 949248
        %v505 = vsel %vm504, %v489, %v491
        %v506 = vsel %vm504, %v491, %v493
        %v507 = vsel %vm504, %v493, %v495
        %v508 = vsel %vm504, %v495, %v497
        %v509 = vsel %vm504, %v497, %v499
        %v510 = vsel %vm504, %v499, %v501
        %v511 = vsel %vm504, %v501, %v503
        %519 = vst [vmem:[#allocation2 + $0x118] sm:$0xff] %v505
        %520 = vst [vmem:[#allocation2 + $0x120] sm:$0xff] %v506
        %521 = vst [vmem:[#allocation2 + $0x128] sm:$0xff] %v507
        %522 = vst [vmem:[#allocation2 + $0x130] sm:$0xff] %v508
        %523 = vst [vmem:[#allocation2 + $0x138] sm:$0xff] %v509
        %524 = vst [vmem:[#allocation2 + $0x140] sm:$0xff] %v510
        %525 = vst [vmem:[#allocation2 + $0x148] sm:$0xff] %v511
        %v526 = vld [vmem:[%s214] sm:$0xff]
        %v527 = vld [vmem:[%s214 + $0x8] sm:$0xff]
        %v528 = vld [vmem:[%s214 + $0x10] sm:$0xff]
        %v529 = vld [vmem:[%s214 + $0x18] sm:$0xff]
        %v530 = vld [vmem:[%s214 + $0x20] sm:$0xff]
        %v531 = vld [vmem:[%s214 + $0x28] sm:$0xff]
        %v532 = vld [vmem:[%s214 + $0x30] sm:$0xff]
        %v533 = vld [vmem:[%s214 + $0x38] sm:$0xff]
        %542 = vrot.lane.b32.xlu0 %v526, 108
        %v543 = vpop.permute.xlu0 %542
        %544 = vrot.lane.b32.xlu0 %v527, 108
        %v545 = vpop.permute.xlu0 %544
        %546 = vrot.lane.b32.xlu0 %v528, 108
        %v547 = vpop.permute.xlu0 %546
        %548 = vrot.lane.b32.xlu0 %v529, 108
        %v549 = vpop.permute.xlu0 %548
        %550 = vrot.lane.b32.xlu0 %v530, 108
        %v551 = vpop.permute.xlu0 %550
        %552 = vrot.lane.b32.xlu0 %v531, 108
        %v553 = vpop.permute.xlu0 %552
        %554 = vrot.lane.b32.xlu0 %v532, 108
        %v555 = vpop.permute.xlu0 %554
        %556 = vrot.lane.b32.xlu0 %v533, 108
        %v557 = vpop.permute.xlu0 %556
        %vm558 = vcmask 883712
        %v559 = vsel %vm558, %v543, %v545
        %v560 = vsel %vm558, %v545, %v547
        %v561 = vsel %vm558, %v547, %v549
        %v562 = vsel %vm558, %v549, %v551
        %v563 = vsel %vm558, %v551, %v553
        %v564 = vsel %vm558, %v553, %v555
        %v565 = vsel %vm558, %v555, %v557
        %573 = vst [vmem:[#allocation2 + $0x150] sm:$0xff] %v559
        %574 = vst [vmem:[#allocation2 + $0x158] sm:$0xff] %v560
        %575 = vst [vmem:[#allocation2 + $0x160] sm:$0xff] %v561
        %576 = vst [vmem:[#allocation2 + $0x168] sm:$0xff] %v562
        %577 = vst [vmem:[#allocation2 + $0x170] sm:$0xff] %v563
        %578 = vst [vmem:[#allocation2 + $0x178] sm:$0xff] %v564
        %579 = vst [vmem:[#allocation2 + $0x180] sm:$0xff] %v565
        %v580 = vld [vmem:[%s214] sm:$0xff]
        %v581 = vld [vmem:[%s214 + $0x8] sm:$0xff]
        %v582 = vld [vmem:[%s214 + $0x10] sm:$0xff]
        %v583 = vld [vmem:[%s214 + $0x18] sm:$0xff]
        %v584 = vld [vmem:[%s214 + $0x20] sm:$0xff]
        %v585 = vld [vmem:[%s214 + $0x28] sm:$0xff]
        %v586 = vld [vmem:[%s214 + $0x30] sm:$0xff]
        %v587 = vld [vmem:[%s214 + $0x38] sm:$0xff]
        %596 = vrot.lane.b32.xlu0 %v580, 107
        %v597 = vpop.permute.xlu0 %596
        %598 = vrot.lane.b32.xlu0 %v581, 107
        %v599 = vpop.permute.xlu0 %598
        %600 = vrot.lane.b32.xlu0 %v582, 107
        %v601 = vpop.permute.xlu0 %600
        %602 = vrot.lane.b32.xlu0 %v583, 107
        %v603 = vpop.permute.xlu0 %602
        %604 = vrot.lane.b32.xlu0 %v584, 107
        %v605 = vpop.permute.xlu0 %604
        %606 = vrot.lane.b32.xlu0 %v585, 107
        %v607 = vpop.permute.xlu0 %606
        %608 = vrot.lane.b32.xlu0 %v586, 107
        %v609 = vpop.permute.xlu0 %608
        %610 = vrot.lane.b32.xlu0 %v587, 107
        %v611 = vpop.permute.xlu0 %610
        %vm612 = vcmask 875520
        %v613 = vsel %vm612, %v597, %v599
        %v614 = vsel %vm612, %v599, %v601
        %v615 = vsel %vm612, %v601, %v603
        %v616 = vsel %vm612, %v603, %v605
        %v617 = vsel %vm612, %v605, %v607
        %v618 = vsel %vm612, %v607, %v609
        %v619 = vsel %vm612, %v609, %v611
        %627 = vst [vmem:[#allocation2 + $0x188] sm:$0xff] %v613
        %628 = vst [vmem:[#allocation2 + $0x190] sm:$0xff] %v614
        %629 = vst [vmem:[#allocation2 + $0x198] sm:$0xff] %v615
        %630 = vst [vmem:[#allocation2 + $0x1a0] sm:$0xff] %v616
        %631 = vst [vmem:[#allocation2 + $0x1a8] sm:$0xff] %v617
        %632 = vst [vmem:[#allocation2 + $0x1b0] sm:$0xff] %v618
        %633 = vst [vmem:[#allocation2 + $0x1b8] sm:$0xff] %v619
        %v634 = vld [vmem:[%s214] sm:$0xff]
        %v635 = vld [vmem:[%s214 + $0x8] sm:$0xff]
        %v636 = vld [vmem:[%s214 + $0x10] sm:$0xff]
        %v637 = vld [vmem:[%s214 + $0x18] sm:$0xff]
        %v638 = vld [vmem:[%s214 + $0x20] sm:$0xff]
        %v639 = vld [vmem:[%s214 + $0x28] sm:$0xff]
        %v640 = vld [vmem:[%s214 + $0x30] sm:$0xff]
        %v641 = vld [vmem:[%s214 + $0x38] sm:$0xff]
        %650 = vrot.lane.b32.xlu0 %v634, 106
        %v651 = vpop.permute.xlu0 %650
        %652 = vrot.lane.b32.xlu0 %v635, 106
        %v653 = vpop.permute.xlu0 %652
        %654 = vrot.lane.b32.xlu0 %v636, 106
        %v655 = vpop.permute.xlu0 %654
        %656 = vrot.lane.b32.xlu0 %v637, 106
        %v657 = vpop.permute.xlu0 %656
        %658 = vrot.lane.b32.xlu0 %v638, 106
        %v659 = vpop.permute.xlu0 %658
        %660 = vrot.lane.b32.xlu0 %v639, 106
        %v661 = vpop.permute.xlu0 %660
        %662 = vrot.lane.b32.xlu0 %v640, 106
        %v663 = vpop.permute.xlu0 %662
        %664 = vrot.lane.b32.xlu0 %v641, 106
        %v665 = vpop.permute.xlu0 %664
        %vm666 = vcmask 867328
        %v667 = vsel %vm666, %v651, %v653
        %v668 = vsel %vm666, %v653, %v655
        %v669 = vsel %vm666, %v655, %v657
        %v670 = vsel %vm666, %v657, %v659
        %v671 = vsel %vm666, %v659, %v661
        %v672 = vsel %vm666, %v661, %v663
        %v673 = vsel %vm666, %v663, %v665
        %681 = vst [vmem:[#allocation2 + $0x1c0] sm:$0xff] %v667
        %682 = vst [vmem:[#allocation2 + $0x1c8] sm:$0xff] %v668
        %683 = vst [vmem:[#allocation2 + $0x1d0] sm:$0xff] %v669
        %684 = vst [vmem:[#allocation2 + $0x1d8] sm:$0xff] %v670
        %685 = vst [vmem:[#allocation2 + $0x1e0] sm:$0xff] %v671
        %686 = vst [vmem:[#allocation2 + $0x1e8] sm:$0xff] %v672
        %687 = vst [vmem:[#allocation2 + $0x1f0] sm:$0xff] %v673
        %v688 = vld [vmem:[%s214] sm:$0xff]
        %v689 = vld [vmem:[%s214 + $0x8] sm:$0xff]
        %v690 = vld [vmem:[%s214 + $0x10] sm:$0xff]
        %v691 = vld [vmem:[%s214 + $0x18] sm:$0xff]
        %v692 = vld [vmem:[%s214 + $0x20] sm:$0xff]
        %v693 = vld [vmem:[%s214 + $0x28] sm:$0xff]
        %v694 = vld [vmem:[%s214 + $0x30] sm:$0xff]
        %v695 = vld [vmem:[%s214 + $0x38] sm:$0xff]
        %704 = vrot.lane.b32.xlu0 %v688, 28
        %v705 = vpop.permute.xlu0 %704
        %706 = vrot.lane.b32.xlu0 %v689, 28
        %v707 = vpop.permute.xlu0 %706
        %708 = vrot.lane.b32.xlu0 %v690, 28
        %v709 = vpop.permute.xlu0 %708
        %710 = vrot.lane.b32.xlu0 %v691, 28
        %v711 = vpop.permute.xlu0 %710
        %712 = vrot.lane.b32.xlu0 %v692, 28
        %v713 = vpop.permute.xlu0 %712
        %714 = vrot.lane.b32.xlu0 %v693, 28
        %v715 = vpop.permute.xlu0 %714
        %716 = vrot.lane.b32.xlu0 %v694, 28
        %v717 = vpop.permute.xlu0 %716
        %718 = vrot.lane.b32.xlu0 %v695, 28
        %v719 = vpop.permute.xlu0 %718
        %vm720 = vcmask 228352
        %v721 = vsel %vm720, %v705, %v707
        %v722 = vsel %vm720, %v707, %v709
        %v723 = vsel %vm720, %v709, %v711
        %v724 = vsel %vm720, %v711, %v713
        %v725 = vsel %vm720, %v713, %v715
        %v726 = vsel %vm720, %v715, %v717
        %v727 = vsel %vm720, %v717, %v719
        %735 = vst [vmem:[#allocation2 + $0x1f8] sm:$0xff] %v721
        %736 = vst [vmem:[#allocation2 + $0x200] sm:$0xff] %v722
        %737 = vst [vmem:[#allocation2 + $0x208] sm:$0xff] %v723
        %738 = vst [vmem:[#allocation2 + $0x210] sm:$0xff] %v724
        %739 = vst [vmem:[#allocation2 + $0x218] sm:$0xff] %v725
        %740 = vst [vmem:[#allocation2 + $0x220] sm:$0xff] %v726
        %741 = vst [vmem:[#allocation2 + $0x228] sm:$0xff] %v727
        %v742 = vld [vmem:[%s214] sm:$0xff]
        %v743 = vld [vmem:[%s214 + $0x8] sm:$0xff]
        %v744 = vld [vmem:[%s214 + $0x10] sm:$0xff]
        %v745 = vld [vmem:[%s214 + $0x18] sm:$0xff]
        %v746 = vld [vmem:[%s214 + $0x20] sm:$0xff]
        %v747 = vld [vmem:[%s214 + $0x28] sm:$0xff]
        %v748 = vld [vmem:[%s214 + $0x30] sm:$0xff]
        %v749 = vld [vmem:[%s214 + $0x38] sm:$0xff]
        %758 = vrot.lane.b32.xlu0 %v742, 27
        %v759 = vpop.permute.xlu0 %758
        %760 = vrot.lane.b32.xlu0 %v743, 27
        %v761 = vpop.permute.xlu0 %760
        %762 = vrot.lane.b32.xlu0 %v744, 27
        %v763 = vpop.permute.xlu0 %762
        %764 = vrot.lane.b32.xlu0 %v745, 27
        %v765 = vpop.permute.xlu0 %764
        %766 = vrot.lane.b32.xlu0 %v746, 27
        %v767 = vpop.permute.xlu0 %766
        %768 = vrot.lane.b32.xlu0 %v747, 27
        %v769 = vpop.permute.xlu0 %768
        %770 = vrot.lane.b32.xlu0 %v748, 27
        %v771 = vpop.permute.xlu0 %770
        %772 = vrot.lane.b32.xlu0 %v749, 27
        %v773 = vpop.permute.xlu0 %772
        %vm774 = vcmask 220160
        %v775 = vsel %vm774, %v759, %v761
        %v776 = vsel %vm774, %v761, %v763
        %v777 = vsel %vm774, %v763, %v765
        %v778 = vsel %vm774, %v765, %v767
        %v779 = vsel %vm774, %v767, %v769
        %v780 = vsel %vm774, %v769, %v771
        %v781 = vsel %vm774, %v771, %v773
        %789 = vst [vmem:[#allocation2 + $0x230] sm:$0xff] %v775
        %790 = vst [vmem:[#allocation2 + $0x238] sm:$0xff] %v776
        %791 = vst [vmem:[#allocation2 + $0x240] sm:$0xff] %v777
        %792 = vst [vmem:[#allocation2 + $0x248] sm:$0xff] %v778
        %793 = vst [vmem:[#allocation2 + $0x250] sm:$0xff] %v779
        %794 = vst [vmem:[#allocation2 + $0x258] sm:$0xff] %v780
        %795 = vst [vmem:[#allocation2 + $0x260] sm:$0xff] %v781
        %v796 = vld [vmem:[%s214] sm:$0xff]
        %v797 = vld [vmem:[%s214 + $0x8] sm:$0xff]
        %v798 = vld [vmem:[%s214 + $0x10] sm:$0xff]
        %v799 = vld [vmem:[%s214 + $0x18] sm:$0xff]
        %v800 = vld [vmem:[%s214 + $0x20] sm:$0xff]
        %v801 = vld [vmem:[%s214 + $0x28] sm:$0xff]
        %v802 = vld [vmem:[%s214 + $0x30] sm:$0xff]
        %v803 = vld [vmem:[%s214 + $0x38] sm:$0xff]
        %812 = vrot.lane.b32.xlu0 %v796, 26
        %v813 = vpop.permute.xlu0 %812
        %814 = vrot.lane.b32.xlu0 %v797, 26
        %v815 = vpop.permute.xlu0 %814
        %816 = vrot.lane.b32.xlu0 %v798, 26
        %v817 = vpop.permute.xlu0 %816
        %818 = vrot.lane.b32.xlu0 %v799, 26
        %v819 = vpop.permute.xlu0 %818
        %820 = vrot.lane.b32.xlu0 %v800, 26
        %v821 = vpop.permute.xlu0 %820
        %822 = vrot.lane.b32.xlu0 %v801, 26
        %v823 = vpop.permute.xlu0 %822
        %824 = vrot.lane.b32.xlu0 %v802, 26
        %v825 = vpop.permute.xlu0 %824
        %826 = vrot.lane.b32.xlu0 %v803, 26
        %v827 = vpop.permute.xlu0 %826
        %vm828 = vcmask 211968
        %v829 = vsel %vm828, %v813, %v815
        %v830 = vsel %vm828, %v815, %v817
        %v831 = vsel %vm828, %v817, %v819
        %v832 = vsel %vm828, %v819, %v821
        %v833 = vsel %vm828, %v821, %v823
        %v834 = vsel %vm828, %v823, %v825
        %v835 = vsel %vm828, %v825, %v827
        %843 = vst [vmem:[#allocation2 + $0x268] sm:$0xff] %v829
        %844 = vst [vmem:[#allocation2 + $0x270] sm:$0xff] %v830
        %845 = vst [vmem:[#allocation2 + $0x278] sm:$0xff] %v831
        %846 = vst [vmem:[#allocation2 + $0x280] sm:$0xff] %v832
        %847 = vst [vmem:[#allocation2 + $0x288] sm:$0xff] %v833
        %848 = vst [vmem:[#allocation2 + $0x290] sm:$0xff] %v834
        %849 = vst [vmem:[#allocation2 + $0x298] sm:$0xff] %v835
        %v850 = vld [vmem:[%s214] sm:$0xff]
        %v851 = vld [vmem:[%s214 + $0x8] sm:$0xff]
        %v852 = vld [vmem:[%s214 + $0x10] sm:$0xff]
        %v853 = vld [vmem:[%s214 + $0x18] sm:$0xff]
        %v854 = vld [vmem:[%s214 + $0x20] sm:$0xff]
        %v855 = vld [vmem:[%s214 + $0x28] sm:$0xff]
        %v856 = vld [vmem:[%s214 + $0x30] sm:$0xff]
        %v857 = vld [vmem:[%s214 + $0x38] sm:$0xff]
        %866 = vrot.lane.b32.xlu0 %v850, 18
        %v867 = vpop.permute.xlu0 %866
        %868 = vrot.lane.b32.xlu0 %v851, 18
        %v869 = vpop.permute.xlu0 %868
        %870 = vrot.lane.b32.xlu0 %v852, 18
        %v871 = vpop.permute.xlu0 %870
        %872 = vrot.lane.b32.xlu0 %v853, 18
        %v873 = vpop.permute.xlu0 %872
        %874 = vrot.lane.b32.xlu0 %v854, 18
        %v875 = vpop.permute.xlu0 %874
        %876 = vrot.lane.b32.xlu0 %v855, 18
        %v877 = vpop.permute.xlu0 %876
        %878 = vrot.lane.b32.xlu0 %v856, 18
        %v879 = vpop.permute.xlu0 %878
        %880 = vrot.lane.b32.xlu0 %v857, 18
        %v881 = vpop.permute.xlu0 %880
        %vm882 = vcmask 146432
        %v883 = vsel %vm882, %v867, %v869
        %v884 = vsel %vm882, %v869, %v871
        %v885 = vsel %vm882, %v871, %v873
        %v886 = vsel %vm882, %v873, %v875
        %v887 = vsel %vm882, %v875, %v877
        %v888 = vsel %vm882, %v877, %v879
        %v889 = vsel %vm882, %v879, %v881
        %897 = vst [vmem:[#allocation2 + $0x2a0] sm:$0xff] %v883
        %898 = vst [vmem:[#allocation2 + $0x2a8] sm:$0xff] %v884
        %899 = vst [vmem:[#allocation2 + $0x2b0] sm:$0xff] %v885
        %900 = vst [vmem:[#allocation2 + $0x2b8] sm:$0xff] %v886
        %901 = vst [vmem:[#allocation2 + $0x2c0] sm:$0xff] %v887
        %902 = vst [vmem:[#allocation2 + $0x2c8] sm:$0xff] %v888
        %903 = vst [vmem:[#allocation2 + $0x2d0] sm:$0xff] %v889
        %v904 = vld [vmem:[%s214] sm:$0xff]
        %v905 = vld [vmem:[%s214 + $0x8] sm:$0xff]
        %v906 = vld [vmem:[%s214 + $0x10] sm:$0xff]
        %v907 = vld [vmem:[%s214 + $0x18] sm:$0xff]
        %v908 = vld [vmem:[%s214 + $0x20] sm:$0xff]
        %v909 = vld [vmem:[%s214 + $0x28] sm:$0xff]
        %v910 = vld [vmem:[%s214 + $0x30] sm:$0xff]
        %v911 = vld [vmem:[%s214 + $0x38] sm:$0xff]
        %920 = vrot.lane.b32.xlu0 %v904, 17
        %v921 = vpop.permute.xlu0 %920
        %922 = vrot.lane.b32.xlu0 %v905, 17
        %v923 = vpop.permute.xlu0 %922
        %924 = vrot.lane.b32.xlu0 %v906, 17
        %v925 = vpop.permute.xlu0 %924
        %926 = vrot.lane.b32.xlu0 %v907, 17
        %v927 = vpop.permute.xlu0 %926
        %928 = vrot.lane.b32.xlu0 %v908, 17
        %v929 = vpop.permute.xlu0 %928
        %930 = vrot.lane.b32.xlu0 %v909, 17
        %v931 = vpop.permute.xlu0 %930
        %932 = vrot.lane.b32.xlu0 %v910, 17
        %v933 = vpop.permute.xlu0 %932
        %934 = vrot.lane.b32.xlu0 %v911, 17
        %v935 = vpop.permute.xlu0 %934
        %vm936 = vcmask 138240
        %v937 = vsel %vm936, %v921, %v923
        %v938 = vsel %vm936, %v923, %v925
        %v939 = vsel %vm936, %v925, %v927
        %v940 = vsel %vm936, %v927, %v929
        %v941 = vsel %vm936, %v929, %v931
        %v942 = vsel %vm936, %v931, %v933
        %v943 = vsel %vm936, %v933, %v935
        %951 = vst [vmem:[#allocation2 + $0x2d8] sm:$0xff] %v937
        %952 = vst [vmem:[#allocation2 + $0x2e0] sm:$0xff] %v938
        %953 = vst [vmem:[#allocation2 + $0x2e8] sm:$0xff] %v939
        %954 = vst [vmem:[#allocation2 + $0x2f0] sm:$0xff] %v940
        %955 = vst [vmem:[#allocation2 + $0x2f8] sm:$0xff] %v941
        %956 = vst [vmem:[#allocation2 + $0x300] sm:$0xff] %v942
        %957 = vst [vmem:[#allocation2 + $0x308] sm:$0xff] %v943
        %v958 = vld [vmem:[%s214] sm:$0xff]
        %v959 = vld [vmem:[%s214 + $0x8] sm:$0xff]
        %v960 = vld [vmem:[%s214 + $0x10] sm:$0xff]
        %v961 = vld [vmem:[%s214 + $0x18] sm:$0xff]
        %v962 = vld [vmem:[%s214 + $0x20] sm:$0xff]
        %v963 = vld [vmem:[%s214 + $0x28] sm:$0xff]
        %v964 = vld [vmem:[%s214 + $0x30] sm:$0xff]
        %v965 = vld [vmem:[%s214 + $0x38] sm:$0xff]
        %974 = vrot.lane.b32.xlu0 %v958, 16
        %v975 = vpop.permute.xlu0 %974
        %976 = vrot.lane.b32.xlu0 %v959, 16
        %v977 = vpop.permute.xlu0 %976
        %978 = vrot.lane.b32.xlu0 %v960, 16
        %v979 = vpop.permute.xlu0 %978
        %980 = vrot.lane.b32.xlu0 %v961, 16
        %v981 = vpop.permute.xlu0 %980
        %982 = vrot.lane.b32.xlu0 %v962, 16
        %v983 = vpop.permute.xlu0 %982
        %984 = vrot.lane.b32.xlu0 %v963, 16
        %v985 = vpop.permute.xlu0 %984
        %986 = vrot.lane.b32.xlu0 %v964, 16
        %v987 = vpop.permute.xlu0 %986
        %988 = vrot.lane.b32.xlu0 %v965, 16
        %v989 = vpop.permute.xlu0 %988
        %vm990 = vcmask 130048
        %v991 = vsel %vm990, %v975, %v977
        %v992 = vsel %vm990, %v977, %v979
        %v993 = vsel %vm990, %v979, %v981
        %v994 = vsel %vm990, %v981, %v983
        %v995 = vsel %vm990, %v983, %v985
        %v996 = vsel %vm990, %v985, %v987
        %v997 = vsel %vm990, %v987, %v989
        %1005 = vst [vmem:[#allocation2 + $0x310] sm:$0xff] %v991
        %1006 = vst [vmem:[#allocation2 + $0x318] sm:$0xff] %v992
        %1007 = vst [vmem:[#allocation2 + $0x320] sm:$0xff] %v993
        %1008 = vst [vmem:[#allocation2 + $0x328] sm:$0xff] %v994
        %1009 = vst [vmem:[#allocation2 + $0x330] sm:$0xff] %v995
        %1010 = vst [vmem:[#allocation2 + $0x338] sm:$0xff] %v996
        %1011 = vst [vmem:[#allocation2 + $0x340] sm:$0xff] %v997
        %v1012 = vld [vmem:[%s214] sm:$0xff]
        %v1013 = vld [vmem:[%s214 + $0x8] sm:$0xff]
        %v1014 = vld [vmem:[%s214 + $0x10] sm:$0xff]
        %v1015 = vld [vmem:[%s214 + $0x18] sm:$0xff]
        %v1016 = vld [vmem:[%s214 + $0x20] sm:$0xff]
        %v1017 = vld [vmem:[%s214 + $0x28] sm:$0xff]
        %v1018 = vld [vmem:[%s214 + $0x30] sm:$0xff]
        %v1019 = vld [vmem:[%s214 + $0x38] sm:$0xff]
        %1028 = vrot.lane.b32.xlu0 %v1012, 8
        %v1029 = vpop.permute.xlu0 %1028
        %1030 = vrot.lane.b32.xlu0 %v1013, 8
        %v1031 = vpop.permute.xlu0 %1030
        %1032 = vrot.lane.b32.xlu0 %v1014, 8
        %v1033 = vpop.permute.xlu0 %1032
        %1034 = vrot.lane.b32.xlu0 %v1015, 8
        %v1035 = vpop.permute.xlu0 %1034
        %1036 = vrot.lane.b32.xlu0 %v1016, 8
        %v1037 = vpop.permute.xlu0 %1036
        %1038 = vrot.lane.b32.xlu0 %v1017, 8
        %v1039 = vpop.permute.xlu0 %1038
        %1040 = vrot.lane.b32.xlu0 %v1018, 8
        %v1041 = vpop.permute.xlu0 %1040
        %1042 = vrot.lane.b32.xlu0 %v1019, 8
        %v1043 = vpop.permute.xlu0 %1042
        %vm1044 = vcmask 64512
        %v1045 = vsel %vm1044, %v1029, %v1031
        %v1046 = vsel %vm1044, %v1031, %v1033
        %v1047 = vsel %vm1044, %v1033, %v1035
        %v1048 = vsel %vm1044, %v1035, %v1037
        %v1049 = vsel %vm1044, %v1037, %v1039
        %v1050 = vsel %vm1044, %v1039, %v1041
        %v1051 = vsel %vm1044, %v1041, %v1043
        %1059 = vst [vmem:[#allocation2 + $0x348] sm:$0xff] %v1045
        %1060 = vst [vmem:[#allocation2 + $0x350] sm:$0xff] %v1046
        %1061 = vst [vmem:[#allocation2 + $0x358] sm:$0xff] %v1047
        %1062 = vst [vmem:[#allocation2 + $0x360] sm:$0xff] %v1048
        %1063 = vst [vmem:[#allocation2 + $0x368] sm:$0xff] %v1049
        %1064 = vst [vmem:[#allocation2 + $0x370] sm:$0xff] %v1050
        %1065 = vst [vmem:[#allocation2 + $0x378] sm:$0xff] %v1051
        %v1066 = vld [vmem:[%s214] sm:$0xff]
        %v1067 = vld [vmem:[%s214 + $0x8] sm:$0xff]
        %v1068 = vld [vmem:[%s214 + $0x10] sm:$0xff]
        %v1069 = vld [vmem:[%s214 + $0x18] sm:$0xff]
        %v1070 = vld [vmem:[%s214 + $0x20] sm:$0xff]
        %v1071 = vld [vmem:[%s214 + $0x28] sm:$0xff]
        %v1072 = vld [vmem:[%s214 + $0x30] sm:$0xff]
        %v1073 = vld [vmem:[%s214 + $0x38] sm:$0xff]
        %1082 = vrot.lane.b32.xlu0 %v1066, 7
        %v1083 = vpop.permute.xlu0 %1082
        %1084 = vrot.lane.b32.xlu0 %v1067, 7
        %v1085 = vpop.permute.xlu0 %1084
        %1086 = vrot.lane.b32.xlu0 %v1068, 7
        %v1087 = vpop.permute.xlu0 %1086
        %1088 = vrot.lane.b32.xlu0 %v1069, 7
        %v1089 = vpop.permute.xlu0 %1088
        %1090 = vrot.lane.b32.xlu0 %v1070, 7
        %v1091 = vpop.permute.xlu0 %1090
        %1092 = vrot.lane.b32.xlu0 %v1071, 7
        %v1093 = vpop.permute.xlu0 %1092
        %1094 = vrot.lane.b32.xlu0 %v1072, 7
        %v1095 = vpop.permute.xlu0 %1094
        %1096 = vrot.lane.b32.xlu0 %v1073, 7
        %v1097 = vpop.permute.xlu0 %1096
        %vm1098 = vcmask 56320
        %v1099 = vsel %vm1098, %v1083, %v1085
        %v1100 = vsel %vm1098, %v1085, %v1087
        %v1101 = vsel %vm1098, %v1087, %v1089
        %v1102 = vsel %vm1098, %v1089, %v1091
        %v1103 = vsel %vm1098, %v1091, %v1093
        %v1104 = vsel %vm1098, %v1093, %v1095
        %v1105 = vsel %vm1098, %v1095, %v1097
        %1113 = vst [vmem:[#allocation2 + $0x380] sm:$0xff] %v1099
        %1114 = vst [vmem:[#allocation2 + $0x388] sm:$0xff] %v1100
        %1115 = vst [vmem:[#allocation2 + $0x390] sm:$0xff] %v1101
        %1116 = vst [vmem:[#allocation2 + $0x398] sm:$0xff] %v1102
        %1117 = vst [vmem:[#allocation2 + $0x3a0] sm:$0xff] %v1103
        %1118 = vst [vmem:[#allocation2 + $0x3a8] sm:$0xff] %v1104
        %1119 = vst [vmem:[#allocation2 + $0x3b0] sm:$0xff] %v1105
        %v1120 = vld [vmem:[%s214] sm:$0xff]
        %v1121 = vld [vmem:[%s214 + $0x8] sm:$0xff]
        %v1122 = vld [vmem:[%s214 + $0x10] sm:$0xff]
        %v1123 = vld [vmem:[%s214 + $0x18] sm:$0xff]
        %v1124 = vld [vmem:[%s214 + $0x20] sm:$0xff]
        %v1125 = vld [vmem:[%s214 + $0x28] sm:$0xff]
        %v1126 = vld [vmem:[%s214 + $0x30] sm:$0xff]
        %v1127 = vld [vmem:[%s214 + $0x38] sm:$0xff]
        %1136 = vrot.lane.b32.xlu0 %v1120, 6
        %v1137 = vpop.permute.xlu0 %1136
        %1138 = vrot.lane.b32.xlu0 %v1121, 6
        %v1139 = vpop.permute.xlu0 %1138
        %1140 = vrot.lane.b32.xlu0 %v1122, 6
        %v1141 = vpop.permute.xlu0 %1140
        %1142 = vrot.lane.b32.xlu0 %v1123, 6
        %v1143 = vpop.permute.xlu0 %1142
        %1144 = vrot.lane.b32.xlu0 %v1124, 6
        %v1145 = vpop.permute.xlu0 %1144
        %1146 = vrot.lane.b32.xlu0 %v1125, 6
        %v1147 = vpop.permute.xlu0 %1146
        %1148 = vrot.lane.b32.xlu0 %v1126, 6
        %v1149 = vpop.permute.xlu0 %1148
        %1150 = vrot.lane.b32.xlu0 %v1127, 6
        %v1151 = vpop.permute.xlu0 %1150
        %vm1152 = vcmask 48128
        %v1153 = vsel %vm1152, %v1137, %v1139
        %v1154 = vsel %vm1152, %v1139, %v1141
        %v1155 = vsel %vm1152, %v1141, %v1143
        %v1156 = vsel %vm1152, %v1143, %v1145
        %v1157 = vsel %vm1152, %v1145, %v1147
        %v1158 = vsel %vm1152, %v1147, %v1149
        %v1159 = vsel %vm1152, %v1149, %v1151
        %1167 = vst [vmem:[#allocation2 + $0x3b8] sm:$0xff] %v1153
        %1168 = vst [vmem:[#allocation2 + $0x3c0] sm:$0xff] %v1154
        %1169 = vst [vmem:[#allocation2 + $0x3c8] sm:$0xff] %v1155
        %1170 = vst [vmem:[#allocation2 + $0x3d0] sm:$0xff] %v1156
        %1171 = vst [vmem:[#allocation2 + $0x3d8] sm:$0xff] %v1157
        %1172 = vst [vmem:[#allocation2 + $0x3e0] sm:$0xff] %v1158
        %1173 = vst [vmem:[#allocation2 + $0x3e8] sm:$0xff] %v1159
        %v1174 = vld [vmem:[%s214 + $0x8] sm:$0xff]
        %v1175 = vld [vmem:[%s214 + $0x10] sm:$0xff]
        %v1176 = vld [vmem:[%s214 + $0x18] sm:$0xff]
        %v1177 = vld [vmem:[%s214 + $0x20] sm:$0xff]
        %v1178 = vld [vmem:[%s214 + $0x28] sm:$0xff]
        %v1179 = vld [vmem:[%s214 + $0x30] sm:$0xff]
        %v1180 = vld [vmem:[%s214 + $0x38] sm:$0xff]
        %v1181 = vld [vmem:[%s214 + $0x40] sm:$0xff]
        %1190 = vrot.lane.b32.xlu0 %v1174, 56
        %v1191 = vpop.permute.xlu0 %1190
        %1192 = vrot.lane.b32.xlu0 %v1175, 56
        %v1193 = vpop.permute.xlu0 %1192
        %1194 = vrot.lane.b32.xlu0 %v1176, 56
        %v1195 = vpop.permute.xlu0 %1194
        %1196 = vrot.lane.b32.xlu0 %v1177, 56
        %v1197 = vpop.permute.xlu0 %1196
        %1198 = vrot.lane.b32.xlu0 %v1178, 56
        %v1199 = vpop.permute.xlu0 %1198
        %1200 = vrot.lane.b32.xlu0 %v1179, 56
        %v1201 = vpop.permute.xlu0 %1200
        %1202 = vrot.lane.b32.xlu0 %v1180, 56
        %v1203 = vpop.permute.xlu0 %1202
        %1204 = vrot.lane.b32.xlu0 %v1181, 56
        %v1205 = vpop.permute.xlu0 %1204
        %vm1206 = vcmask 457728
        %v1207 = vsel %vm1206, %v1191, %v1193
        %v1208 = vsel %vm1206, %v1193, %v1195
        %v1209 = vsel %vm1206, %v1195, %v1197
        %v1210 = vsel %vm1206, %v1197, %v1199
        %v1211 = vsel %vm1206, %v1199, %v1201
        %v1212 = vsel %vm1206, %v1201, %v1203
        %v1213 = vsel %vm1206, %v1203, %v1205
        %1221 = vst [vmem:[#allocation2 + $0x3f0] sm:$0xff] %v1207
        %1222 = vst [vmem:[#allocation2 + $0x3f8] sm:$0xff] %v1208
        %1223 = vst [vmem:[#allocation2 + $0x400] sm:$0xff] %v1209
        %1224 = vst [vmem:[#allocation2 + $0x408] sm:$0xff] %v1210
        %1225 = vst [vmem:[#allocation2 + $0x410] sm:$0xff] %v1211
        %1226 = vst [vmem:[#allocation2 + $0x418] sm:$0xff] %v1212
        %1227 = vst [vmem:[#allocation2 + $0x420] sm:$0xff] %v1213
        %v1228 = vld [vmem:[%s214 + $0x8] sm:$0xff]
        %v1229 = vld [vmem:[%s214 + $0x10] sm:$0xff]
        %v1230 = vld [vmem:[%s214 + $0x18] sm:$0xff]
        %v1231 = vld [vmem:[%s214 + $0x20] sm:$0xff]
        %v1232 = vld [vmem:[%s214 + $0x28] sm:$0xff]
        %v1233 = vld [vmem:[%s214 + $0x30] sm:$0xff]
        %v1234 = vld [vmem:[%s214 + $0x38] sm:$0xff]
        %v1235 = vld [vmem:[%s214 + $0x40] sm:$0xff]
        %1244 = vrot.lane.b32.xlu0 %v1228, 55
        %v1245 = vpop.permute.xlu0 %1244
        %1246 = vrot.lane.b32.xlu0 %v1229, 55
        %v1247 = vpop.permute.xlu0 %1246
        %1248 = vrot.lane.b32.xlu0 %v1230, 55
        %v1249 = vpop.permute.xlu0 %1248
        %1250 = vrot.lane.b32.xlu0 %v1231, 55
        %v1251 = vpop.permute.xlu0 %1250
        %1252 = vrot.lane.b32.xlu0 %v1232, 55
        %v1253 = vpop.permute.xlu0 %1252
        %1254 = vrot.lane.b32.xlu0 %v1233, 55
        %v1255 = vpop.permute.xlu0 %1254
        %1256 = vrot.lane.b32.xlu0 %v1234, 55
        %v1257 = vpop.permute.xlu0 %1256
        %1258 = vrot.lane.b32.xlu0 %v1235, 55
        %v1259 = vpop.permute.xlu0 %1258
        %vm1260 = vcmask 449536
        %v1261 = vsel %vm1260, %v1245, %v1247
        %v1262 = vsel %vm1260, %v1247, %v1249
        %v1263 = vsel %vm1260, %v1249, %v1251
        %v1264 = vsel %vm1260, %v1251, %v1253
        %v1265 = vsel %vm1260, %v1253, %v1255
        %v1266 = vsel %vm1260, %v1255, %v1257
        %v1267 = vsel %vm1260, %v1257, %v1259
        %1275 = vst [vmem:[#allocation2 + $0x428] sm:$0xff] %v1261
        %1276 = vst [vmem:[#allocation2 + $0x430] sm:$0xff] %v1262
        %1277 = vst [vmem:[#allocation2 + $0x438] sm:$0xff] %v1263
        %1278 = vst [vmem:[#allocation2 + $0x440] sm:$0xff] %v1264
        %1279 = vst [vmem:[#allocation2 + $0x448] sm:$0xff] %v1265
        %1280 = vst [vmem:[#allocation2 + $0x450] sm:$0xff] %v1266
        %1281 = vst [vmem:[#allocation2 + $0x458] sm:$0xff] %v1267
        %v1282 = vld [vmem:[%s214 + $0x8] sm:$0xff]
        %v1283 = vld [vmem:[%s214 + $0x10] sm:$0xff]
        %v1284 = vld [vmem:[%s214 + $0x18] sm:$0xff]
        %v1285 = vld [vmem:[%s214 + $0x20] sm:$0xff]
        %v1286 = vld [vmem:[%s214 + $0x28] sm:$0xff]
        %v1287 = vld [vmem:[%s214 + $0x30] sm:$0xff]
        %v1288 = vld [vmem:[%s214 + $0x38] sm:$0xff]
        %v1289 = vld [vmem:[%s214 + $0x40] sm:$0xff]
        %1298 = vrot.lane.b32.xlu0 %v1282, 54
        %v1299 = vpop.permute.xlu0 %1298
        %1300 = vrot.lane.b32.xlu0 %v1283, 54
        %v1301 = vpop.permute.xlu0 %1300
        %1302 = vrot.lane.b32.xlu0 %v1284, 54
        %v1303 = vpop.permute.xlu0 %1302
        %1304 = vrot.lane.b32.xlu0 %v1285, 54
        %v1305 = vpop.permute.xlu0 %1304
        %1306 = vrot.lane.b32.xlu0 %v1286, 54
        %v1307 = vpop.permute.xlu0 %1306
        %1308 = vrot.lane.b32.xlu0 %v1287, 54
        %v1309 = vpop.permute.xlu0 %1308
        %1310 = vrot.lane.b32.xlu0 %v1288, 54
        %v1311 = vpop.permute.xlu0 %1310
        %1312 = vrot.lane.b32.xlu0 %v1289, 54
        %v1313 = vpop.permute.xlu0 %1312
        %vm1314 = vcmask 441344
        %v1315 = vsel %vm1314, %v1299, %v1301
        %v1316 = vsel %vm1314, %v1301, %v1303
        %v1317 = vsel %vm1314, %v1303, %v1305
        %v1318 = vsel %vm1314, %v1305, %v1307
        %v1319 = vsel %vm1314, %v1307, %v1309
        %v1320 = vsel %vm1314, %v1309, %v1311
        %v1321 = vsel %vm1314, %v1311, %v1313
        %1329 = vst [vmem:[#allocation2 + $0x460] sm:$0xff] %v1315
        %1330 = vst [vmem:[#allocation2 + $0x468] sm:$0xff] %v1316
        %1331 = vst [vmem:[#allocation2 + $0x470] sm:$0xff] %v1317
        %1332 = vst [vmem:[#allocation2 + $0x478] sm:$0xff] %v1318
        %1333 = vst [vmem:[#allocation2 + $0x480] sm:$0xff] %v1319
        %1334 = vst [vmem:[#allocation2 + $0x488] sm:$0xff] %v1320
        %1335 = vst [vmem:[#allocation2 + $0x490] sm:$0xff] %v1321
        %v1336 = vld [vmem:[%s214 + $0x8] sm:$0xff]
        %v1337 = vld [vmem:[%s214 + $0x10] sm:$0xff]
        %v1338 = vld [vmem:[%s214 + $0x18] sm:$0xff]
        %v1339 = vld [vmem:[%s214 + $0x20] sm:$0xff]
        %v1340 = vld [vmem:[%s214 + $0x28] sm:$0xff]
        %v1341 = vld [vmem:[%s214 + $0x30] sm:$0xff]
        %v1342 = vld [vmem:[%s214 + $0x38] sm:$0xff]
        %v1343 = vld [vmem:[%s214 + $0x40] sm:$0xff]
        %1352 = vrot.lane.b32.xlu0 %v1336, 46
        %v1353 = vpop.permute.xlu0 %1352
        %1354 = vrot.lane.b32.xlu0 %v1337, 46
        %v1355 = vpop.permute.xlu0 %1354
        %1356 = vrot.lane.b32.xlu0 %v1338, 46
        %v1357 = vpop.permute.xlu0 %1356
        %1358 = vrot.lane.b32.xlu0 %v1339, 46
        %v1359 = vpop.permute.xlu0 %1358
        %1360 = vrot.lane.b32.xlu0 %v1340, 46
        %v1361 = vpop.permute.xlu0 %1360
        %1362 = vrot.lane.b32.xlu0 %v1341, 46
        %v1363 = vpop.permute.xlu0 %1362
        %1364 = vrot.lane.b32.xlu0 %v1342, 46
        %v1365 = vpop.permute.xlu0 %1364
        %1366 = vrot.lane.b32.xlu0 %v1343, 46
        %v1367 = vpop.permute.xlu0 %1366
        %vm1368 = vcmask 375808
        %v1369 = vsel %vm1368, %v1353, %v1355
        %v1370 = vsel %vm1368, %v1355, %v1357
        %v1371 = vsel %vm1368, %v1357, %v1359
        %v1372 = vsel %vm1368, %v1359, %v1361
        %v1373 = vsel %vm1368, %v1361, %v1363
        %v1374 = vsel %vm1368, %v1363, %v1365
        %v1375 = vsel %vm1368, %v1365, %v1367
        %1383 = vst [vmem:[#allocation2 + $0x498] sm:$0xff] %v1369
        %1384 = vst [vmem:[#allocation2 + $0x4a0] sm:$0xff] %v1370
        %1385 = vst [vmem:[#allocation2 + $0x4a8] sm:$0xff] %v1371
        %1386 = vst [vmem:[#allocation2 + $0x4b0] sm:$0xff] %v1372
        %1387 = vst [vmem:[#allocation2 + $0x4b8] sm:$0xff] %v1373
        %1388 = vst [vmem:[#allocation2 + $0x4c0] sm:$0xff] %v1374
        %1389 = vst [vmem:[#allocation2 + $0x4c8] sm:$0xff] %v1375
        %v1390 = vld [vmem:[%s214 + $0x8] sm:$0xff]
        %v1391 = vld [vmem:[%s214 + $0x10] sm:$0xff]
        %v1392 = vld [vmem:[%s214 + $0x18] sm:$0xff]
        %v1393 = vld [vmem:[%s214 + $0x20] sm:$0xff]
        %v1394 = vld [vmem:[%s214 + $0x28] sm:$0xff]
        %v1395 = vld [vmem:[%s214 + $0x30] sm:$0xff]
        %v1396 = vld [vmem:[%s214 + $0x38] sm:$0xff]
        %v1397 = vld [vmem:[%s214 + $0x40] sm:$0xff]
        %1406 = vrot.lane.b32.xlu0 %v1390, 45
        %v1407 = vpop.permute.xlu0 %1406
        %1408 = vrot.lane.b32.xlu0 %v1391, 45
        %v1409 = vpop.permute.xlu0 %1408
        %1410 = vrot.lane.b32.xlu0 %v1392, 45
        %v1411 = vpop.permute.xlu0 %1410
        %1412 = vrot.lane.b32.xlu0 %v1393, 45
        %v1413 = vpop.permute.xlu0 %1412
        %1414 = vrot.lane.b32.xlu0 %v1394, 45
        %v1415 = vpop.permute.xlu0 %1414
        %1416 = vrot.lane.b32.xlu0 %v1395, 45
        %v1417 = vpop.permute.xlu0 %1416
        %1418 = vrot.lane.b32.xlu0 %v1396, 45
        %v1419 = vpop.permute.xlu0 %1418
        %1420 = vrot.lane.b32.xlu0 %v1397, 45
        %v1421 = vpop.permute.xlu0 %1420
        %vm1422 = vcmask 367616
        %v1423 = vsel %vm1422, %v1407, %v1409
        %v1424 = vsel %vm1422, %v1409, %v1411
        %v1425 = vsel %vm1422, %v1411, %v1413
        %v1426 = vsel %vm1422, %v1413, %v1415
        %v1427 = vsel %vm1422, %v1415, %v1417
        %v1428 = vsel %vm1422, %v1417, %v1419
        %v1429 = vsel %vm1422, %v1419, %v1421
        %1437 = vst [vmem:[#allocation2 + $0x4d0] sm:$0xff] %v1423
        %1438 = vst [vmem:[#allocation2 + $0x4d8] sm:$0xff] %v1424
        %1439 = vst [vmem:[#allocation2 + $0x4e0] sm:$0xff] %v1425
        %1440 = vst [vmem:[#allocation2 + $0x4e8] sm:$0xff] %v1426
        %1441 = vst [vmem:[#allocation2 + $0x4f0] sm:$0xff] %v1427
        %1442 = vst [vmem:[#allocation2 + $0x4f8] sm:$0xff] %v1428
        %1443 = vst [vmem:[#allocation2 + $0x500] sm:$0xff] %v1429
        %v1444 = vld [vmem:[%s214 + $0x8] sm:$0xff]
        %v1445 = vld [vmem:[%s214 + $0x10] sm:$0xff]
        %v1446 = vld [vmem:[%s214 + $0x18] sm:$0xff]
        %v1447 = vld [vmem:[%s214 + $0x20] sm:$0xff]
        %v1448 = vld [vmem:[%s214 + $0x28] sm:$0xff]
        %v1449 = vld [vmem:[%s214 + $0x30] sm:$0xff]
        %v1450 = vld [vmem:[%s214 + $0x38] sm:$0xff]
        %v1451 = vld [vmem:[%s214 + $0x40] sm:$0xff]
        %1460 = vrot.lane.b32.xlu0 %v1444, 44
        %v1461 = vpop.permute.xlu0 %1460
        %1462 = vrot.lane.b32.xlu0 %v1445, 44
        %v1463 = vpop.permute.xlu0 %1462
        %1464 = vrot.lane.b32.xlu0 %v1446, 44
        %v1465 = vpop.permute.xlu0 %1464
        %1466 = vrot.lane.b32.xlu0 %v1447, 44
        %v1467 = vpop.permute.xlu0 %1466
        %1468 = vrot.lane.b32.xlu0 %v1448, 44
        %v1469 = vpop.permute.xlu0 %1468
        %1470 = vrot.lane.b32.xlu0 %v1449, 44
        %v1471 = vpop.permute.xlu0 %1470
        %1472 = vrot.lane.b32.xlu0 %v1450, 44
        %v1473 = vpop.permute.xlu0 %1472
        %1474 = vrot.lane.b32.xlu0 %v1451, 44
        %v1475 = vpop.permute.xlu0 %1474
        %vm1476 = vcmask 359424
        %v1477 = vsel %vm1476, %v1461, %v1463
        %v1478 = vsel %vm1476, %v1463, %v1465
        %v1479 = vsel %vm1476, %v1465, %v1467
        %v1480 = vsel %vm1476, %v1467, %v1469
        %v1481 = vsel %vm1476, %v1469, %v1471
        %v1482 = vsel %vm1476, %v1471, %v1473
        %v1483 = vsel %vm1476, %v1473, %v1475
        %1491 = vst [vmem:[#allocation2 + $0x508] sm:$0xff] %v1477
        %1492 = vst [vmem:[#allocation2 + $0x510] sm:$0xff] %v1478
        %1493 = vst [vmem:[#allocation2 + $0x518] sm:$0xff] %v1479
        %1494 = vst [vmem:[#allocation2 + $0x520] sm:$0xff] %v1480
        %1495 = vst [vmem:[#allocation2 + $0x528] sm:$0xff] %v1481
        %1496 = vst [vmem:[#allocation2 + $0x530] sm:$0xff] %v1482
        %1497 = vst [vmem:[#allocation2 + $0x538] sm:$0xff] %v1483
        %v1498 = vld [vmem:[%s214 + $0x8] sm:$0xff]
        %v1499 = vld [vmem:[%s214 + $0x10] sm:$0xff]
        %v1500 = vld [vmem:[%s214 + $0x18] sm:$0xff]
        %v1501 = vld [vmem:[%s214 + $0x20] sm:$0xff]
        %v1502 = vld [vmem:[%s214 + $0x28] sm:$0xff]
        %v1503 = vld [vmem:[%s214 + $0x30] sm:$0xff]
        %v1504 = vld [vmem:[%s214 + $0x38] sm:$0xff]
        %v1505 = vld [vmem:[%s214 + $0x40] sm:$0xff]
        %1514 = vrot.lane.b32.xlu0 %v1498, 36
        %v1515 = vpop.permute.xlu0 %1514
        %1516 = vrot.lane.b32.xlu0 %v1499, 36
        %v1517 = vpop.permute.xlu0 %1516
        %1518 = vrot.lane.b32.xlu0 %v1500, 36
        %v1519 = vpop.permute.xlu0 %1518
        %1520 = vrot.lane.b32.xlu0 %v1501, 36
        %v1521 = vpop.permute.xlu0 %1520
        %1522 = vrot.lane.b32.xlu0 %v1502, 36
        %v1523 = vpop.permute.xlu0 %1522
        %1524 = vrot.lane.b32.xlu0 %v1503, 36
        %v1525 = vpop.permute.xlu0 %1524
        %1526 = vrot.lane.b32.xlu0 %v1504, 36
        %v1527 = vpop.permute.xlu0 %1526
        %1528 = vrot.lane.b32.xlu0 %v1505, 36
        %v1529 = vpop.permute.xlu0 %1528
        %vm1530 = vcmask 293888
        %v1531 = vsel %vm1530, %v1515, %v1517
        %v1532 = vsel %vm1530, %v1517, %v1519
        %v1533 = vsel %vm1530, %v1519, %v1521
        %v1534 = vsel %vm1530, %v1521, %v1523
        %v1535 = vsel %vm1530, %v1523, %v1525
        %v1536 = vsel %vm1530, %v1525, %v1527
        %v1537 = vsel %vm1530, %v1527, %v1529
        %1545 = vst [vmem:[#allocation2 + $0x540] sm:$0xff] %v1531
        %1546 = vst [vmem:[#allocation2 + $0x548] sm:$0xff] %v1532
        %1547 = vst [vmem:[#allocation2 + $0x550] sm:$0xff] %v1533
        %1548 = vst [vmem:[#allocation2 + $0x558] sm:$0xff] %v1534
        %1549 = vst [vmem:[#allocation2 + $0x560] sm:$0xff] %v1535
        %1550 = vst [vmem:[#allocation2 + $0x568] sm:$0xff] %v1536
        %1551 = vst [vmem:[#allocation2 + $0x570] sm:$0xff] %v1537
        %v1552 = vld [vmem:[%s214 + $0x8] sm:$0xff]
        %v1553 = vld [vmem:[%s214 + $0x10] sm:$0xff]
        %v1554 = vld [vmem:[%s214 + $0x18] sm:$0xff]
        %v1555 = vld [vmem:[%s214 + $0x20] sm:$0xff]
        %v1556 = vld [vmem:[%s214 + $0x28] sm:$0xff]
        %v1557 = vld [vmem:[%s214 + $0x30] sm:$0xff]
        %v1558 = vld [vmem:[%s214 + $0x38] sm:$0xff]
        %v1559 = vld [vmem:[%s214 + $0x40] sm:$0xff]
        %1568 = vrot.lane.b32.xlu0 %v1552, 35
        %v1569 = vpop.permute.xlu0 %1568
        %1570 = vrot.lane.b32.xlu0 %v1553, 35
        %v1571 = vpop.permute.xlu0 %1570
        %1572 = vrot.lane.b32.xlu0 %v1554, 35
        %v1573 = vpop.permute.xlu0 %1572
        %1574 = vrot.lane.b32.xlu0 %v1555, 35
        %v1575 = vpop.permute.xlu0 %1574
        %1576 = vrot.lane.b32.xlu0 %v1556, 35
        %v1577 = vpop.permute.xlu0 %1576
        %1578 = vrot.lane.b32.xlu0 %v1557, 35
        %v1579 = vpop.permute.xlu0 %1578
        %1580 = vrot.lane.b32.xlu0 %v1558, 35
        %v1581 = vpop.permute.xlu0 %1580
        %1582 = vrot.lane.b32.xlu0 %v1559, 35
        %v1583 = vpop.permute.xlu0 %1582
        %vm1584 = vcmask 285696
        %v1585 = vsel %vm1584, %v1569, %v1571
        %v1586 = vsel %vm1584, %v1571, %v1573
        %v1587 = vsel %vm1584, %v1573, %v1575
        %v1588 = vsel %vm1584, %v1575, %v1577
        %v1589 = vsel %vm1584, %v1577, %v1579
        %v1590 = vsel %vm1584, %v1579, %v1581
        %v1591 = vsel %vm1584, %v1581, %v1583
        %1599 = vst [vmem:[#allocation2 + $0x578] sm:$0xff] %v1585
        %1600 = vst [vmem:[#allocation2 + $0x580] sm:$0xff] %v1586
        %1601 = vst [vmem:[#allocation2 + $0x588] sm:$0xff] %v1587
        %1602 = vst [vmem:[#allocation2 + $0x590] sm:$0xff] %v1588
        %1603 = vst [vmem:[#allocation2 + $0x598] sm:$0xff] %v1589
        %1604 = vst [vmem:[#allocation2 + $0x5a0] sm:$0xff] %v1590
        %1605 = vst [vmem:[#allocation2 + $0x5a8] sm:$0xff] %v1591
        %v1606 = vld [vmem:[%s214 + $0x8] sm:$0xff]
        %v1607 = vld [vmem:[%s214 + $0x10] sm:$0xff]
        %v1608 = vld [vmem:[%s214 + $0x18] sm:$0xff]
        %v1609 = vld [vmem:[%s214 + $0x20] sm:$0xff]
        %v1610 = vld [vmem:[%s214 + $0x28] sm:$0xff]
        %v1611 = vld [vmem:[%s214 + $0x30] sm:$0xff]
        %v1612 = vld [vmem:[%s214 + $0x38] sm:$0xff]
        %v1613 = vld [vmem:[%s214 + $0x40] sm:$0xff]
        %1622 = vrot.lane.b32.xlu0 %v1606, 34
        %v1623 = vpop.permute.xlu0 %1622
        %1624 = vrot.lane.b32.xlu0 %v1607, 34
        %v1625 = vpop.permute.xlu0 %1624
        %1626 = vrot.lane.b32.xlu0 %v1608, 34
        %v1627 = vpop.permute.xlu0 %1626
        %1628 = vrot.lane.b32.xlu0 %v1609, 34
        %v1629 = vpop.permute.xlu0 %1628
        %1630 = vrot.lane.b32.xlu0 %v1610, 34
        %v1631 = vpop.permute.xlu0 %1630
        %1632 = vrot.lane.b32.xlu0 %v1611, 34
        %v1633 = vpop.permute.xlu0 %1632
        %1634 = vrot.lane.b32.xlu0 %v1612, 34
        %v1635 = vpop.permute.xlu0 %1634
        %1636 = vrot.lane.b32.xlu0 %v1613, 34
        %v1637 = vpop.permute.xlu0 %1636
        %vm1638 = vcmask 277504
        %v1639 = vsel %vm1638, %v1623, %v1625
        %v1640 = vsel %vm1638, %v1625, %v1627
        %v1641 = vsel %vm1638, %v1627, %v1629
        %v1642 = vsel %vm1638, %v1629, %v1631
        %v1643 = vsel %vm1638, %v1631, %v1633
        %v1644 = vsel %vm1638, %v1633, %v1635
        %v1645 = vsel %vm1638, %v1635, %v1637
        %1653 = vst [vmem:[#allocation2 + $0x5b0] sm:$0xff] %v1639
        %1654 = vst [vmem:[#allocation2 + $0x5b8] sm:$0xff] %v1640
        %1655 = vst [vmem:[#allocation2 + $0x5c0] sm:$0xff] %v1641
        %1656 = vst [vmem:[#allocation2 + $0x5c8] sm:$0xff] %v1642
        %1657 = vst [vmem:[#allocation2 + $0x5d0] sm:$0xff] %v1643
        %1658 = vst [vmem:[#allocation2 + $0x5d8] sm:$0xff] %v1644
        %1659 = vst [vmem:[#allocation2 + $0x5e0] sm:$0xff] %v1645
        %v1660 = vld [vmem:[#allocation2] sm:$0xff]
        %v1661 = vld [vmem:[#allocation2 + $0x8] sm:$0xff]
        %v1662 = vld [vmem:[#allocation2 + $0x10] sm:$0xff]
        %v1663 = vld [vmem:[#allocation2 + $0x18] sm:$0xff]
        %v1664 = vld [vmem:[#allocation2 + $0x20] sm:$0xff]
        %v1665 = vld [vmem:[#allocation2 + $0x28] sm:$0xff]
        %v1666 = vld [vmem:[#allocation2 + $0x30] sm:$0xff]
        %v1667 = vld [vmem:[#allocation2 + $0x38] sm:$0xff]
        %v1668 = vld [vmem:[#allocation2 + $0x40] sm:$0xff]
        %v1669 = vld [vmem:[#allocation2 + $0x48] sm:$0xff]
        %v1670 = vld [vmem:[#allocation2 + $0x50] sm:$0xff]
        %v1671 = vld [vmem:[#allocation2 + $0x58] sm:$0xff]
        %v1672 = vld [vmem:[#allocation2 + $0x60] sm:$0xff]
        %v1673 = vld [vmem:[#allocation2 + $0x68] sm:$0xff]
        %v1674 = vld [vmem:[#allocation2 + $0x70] sm:$0xff]
        %v1675 = vld [vmem:[#allocation2 + $0x78] sm:$0xff]
        %v1676 = vld [vmem:[#allocation2 + $0x80] sm:$0xff]
        %v1677 = vld [vmem:[#allocation2 + $0x88] sm:$0xff]
        %v1678 = vld [vmem:[#allocation2 + $0x90] sm:$0xff]
        %v1679 = vld [vmem:[#allocation2 + $0x98] sm:$0xff]
        %v1680 = vld [vmem:[#allocation2 + $0xa0] sm:$0xff]
        %v1681 = vld [vmem:[#allocation2 + $0xa8] sm:$0xff]
        %v1682 = vld [vmem:[#allocation2 + $0xb0] sm:$0xff]
        %v1683 = vld [vmem:[#allocation2 + $0xb8] sm:$0xff]
        %v1684 = vld [vmem:[#allocation2 + $0xc0] sm:$0xff]
        %v1685 = vld [vmem:[#allocation2 + $0xc8] sm:$0xff]
        %v1686 = vld [vmem:[#allocation2 + $0xd0] sm:$0xff]
        %v1687 = vld [vmem:[#allocation2 + $0xd8] sm:$0xff]
        %v1688 = vld [vmem:[#allocation2 + $0xe0] sm:$0xff]
        %v1689 = vld [vmem:[#allocation2 + $0xe8] sm:$0xff]
        %v1690 = vld [vmem:[#allocation2 + $0xf0] sm:$0xff]
        %v1691 = vld [vmem:[#allocation2 + $0xf8] sm:$0xff]
        %v1692 = vld [vmem:[#allocation2 + $0x100] sm:$0xff]
        %v1693 = vld [vmem:[#allocation2 + $0x108] sm:$0xff]
        %v1694 = vld [vmem:[#allocation2 + $0x110] sm:$0xff]
        %v1695 = vld [vmem:[#allocation2 + $0x118] sm:$0xff]
        %v1696 = vld [vmem:[#allocation2 + $0x120] sm:$0xff]
        %v1697 = vld [vmem:[#allocation2 + $0x128] sm:$0xff]
        %v1698 = vld [vmem:[#allocation2 + $0x130] sm:$0xff]
        %v1699 = vld [vmem:[#allocation2 + $0x138] sm:$0xff]
        %v1700 = vld [vmem:[#allocation2 + $0x140] sm:$0xff]
        %v1701 = vld [vmem:[#allocation2 + $0x148] sm:$0xff]
        %v1702 = vld [vmem:[#allocation2 + $0x150] sm:$0xff]
        %v1703 = vld [vmem:[#allocation2 + $0x158] sm:$0xff]
        %v1704 = vld [vmem:[#allocation2 + $0x160] sm:$0xff]
        %v1705 = vld [vmem:[#allocation2 + $0x168] sm:$0xff]
        %v1706 = vld [vmem:[#allocation2 + $0x170] sm:$0xff]
        %v1707 = vld [vmem:[#allocation2 + $0x178] sm:$0xff]
        %v1708 = vld [vmem:[#allocation2 + $0x180] sm:$0xff]
        %v1709 = vld [vmem:[#allocation2 + $0x188] sm:$0xff]
        %v1710 = vld [vmem:[#allocation2 + $0x190] sm:$0xff]
        %v1711 = vld [vmem:[#allocation2 + $0x198] sm:$0xff]
        %v1712 = vld [vmem:[#allocation2 + $0x1a0] sm:$0xff]
        %v1713 = vld [vmem:[#allocation2 + $0x1a8] sm:$0xff]
        %v1714 = vld [vmem:[#allocation2 + $0x1b0] sm:$0xff]
        %v1715 = vld [vmem:[#allocation2 + $0x1b8] sm:$0xff]
        %v1716 = vld [vmem:[#allocation2 + $0x1c0] sm:$0xff]
        %v1717 = vld [vmem:[#allocation2 + $0x1c8] sm:$0xff]
        %v1718 = vld [vmem:[#allocation2 + $0x1d0] sm:$0xff]
        %v1719 = vld [vmem:[#allocation2 + $0x1d8] sm:$0xff]
        %v1720 = vld [vmem:[#allocation2 + $0x1e0] sm:$0xff]
        %v1721 = vld [vmem:[#allocation2 + $0x1e8] sm:$0xff]
        %v1722 = vld [vmem:[#allocation2 + $0x1f0] sm:$0xff]
        %v1723 = vld [vmem:[#allocation2 + $0x1f8] sm:$0xff]
        %v1724 = vld [vmem:[#allocation2 + $0x200] sm:$0xff]
        %v1725 = vld [vmem:[#allocation2 + $0x208] sm:$0xff]
        %v1726 = vld [vmem:[#allocation2 + $0x210] sm:$0xff]
        %v1727 = vld [vmem:[#allocation2 + $0x218] sm:$0xff]
        %v1728 = vld [vmem:[#allocation2 + $0x220] sm:$0xff]
        %v1729 = vld [vmem:[#allocation2 + $0x228] sm:$0xff]
        %v1730 = vld [vmem:[#allocation2 + $0x230] sm:$0xff]
        %v1731 = vld [vmem:[#allocation2 + $0x238] sm:$0xff]
        %v1732 = vld [vmem:[#allocation2 + $0x240] sm:$0xff]
        %v1733 = vld [vmem:[#allocation2 + $0x248] sm:$0xff]
        %v1734 = vld [vmem:[#allocation2 + $0x250] sm:$0xff]
        %v1735 = vld [vmem:[#allocation2 + $0x258] sm:$0xff]
        %v1736 = vld [vmem:[#allocation2 + $0x260] sm:$0xff]
        %v1737 = vld [vmem:[#allocation2 + $0x268] sm:$0xff]
        %v1738 = vld [vmem:[#allocation2 + $0x270] sm:$0xff]
        %v1739 = vld [vmem:[#allocation2 + $0x278] sm:$0xff]
        %v1740 = vld [vmem:[#allocation2 + $0x280] sm:$0xff]
        %v1741 = vld [vmem:[#allocation2 + $0x288] sm:$0xff]
        %v1742 = vld [vmem:[#allocation2 + $0x290] sm:$0xff]
        %v1743 = vld [vmem:[#allocation2 + $0x298] sm:$0xff]
        %v1744 = vld [vmem:[#allocation2 + $0x2a0] sm:$0xff]
        %v1745 = vld [vmem:[#allocation2 + $0x2a8] sm:$0xff]
        %v1746 = vld [vmem:[#allocation2 + $0x2b0] sm:$0xff]
        %v1747 = vld [vmem:[#allocation2 + $0x2b8] sm:$0xff]
        %v1748 = vld [vmem:[#allocation2 + $0x2c0] sm:$0xff]
        %v1749 = vld [vmem:[#allocation2 + $0x2c8] sm:$0xff]
        %v1750 = vld [vmem:[#allocation2 + $0x2d0] sm:$0xff]
        %v1751 = vld [vmem:[#allocation2 + $0x2d8] sm:$0xff]
        %v1752 = vld [vmem:[#allocation2 + $0x2e0] sm:$0xff]
        %v1753 = vld [vmem:[#allocation2 + $0x2e8] sm:$0xff]
        %v1754 = vld [vmem:[#allocation2 + $0x2f0] sm:$0xff]
        %v1755 = vld [vmem:[#allocation2 + $0x2f8] sm:$0xff]
        %v1756 = vld [vmem:[#allocation2 + $0x300] sm:$0xff]
        %v1757 = vld [vmem:[#allocation2 + $0x308] sm:$0xff]
        %v1758 = vld [vmem:[#allocation2 + $0x310] sm:$0xff]
        %v1759 = vld [vmem:[#allocation2 + $0x318] sm:$0xff]
        %v1760 = vld [vmem:[#allocation2 + $0x320] sm:$0xff]
        %v1761 = vld [vmem:[#allocation2 + $0x328] sm:$0xff]
        %v1762 = vld [vmem:[#allocation2 + $0x330] sm:$0xff]
        %v1763 = vld [vmem:[#allocation2 + $0x338] sm:$0xff]
        %v1764 = vld [vmem:[#allocation2 + $0x340] sm:$0xff]
        %v1765 = vld [vmem:[#allocation2 + $0x348] sm:$0xff]
        %v1766 = vld [vmem:[#allocation2 + $0x350] sm:$0xff]
        %v1767 = vld [vmem:[#allocation2 + $0x358] sm:$0xff]
        %v1768 = vld [vmem:[#allocation2 + $0x360] sm:$0xff]
        %v1769 = vld [vmem:[#allocation2 + $0x368] sm:$0xff]
        %v1770 = vld [vmem:[#allocation2 + $0x370] sm:$0xff]
        %v1771 = vld [vmem:[#allocation2 + $0x378] sm:$0xff]
        %v1772 = vld [vmem:[#allocation2 + $0x380] sm:$0xff]
        %v1773 = vld [vmem:[#allocation2 + $0x388] sm:$0xff]
        %v1774 = vld [vmem:[#allocation2 + $0x390] sm:$0xff]
        %v1775 = vld [vmem:[#allocation2 + $0x398] sm:$0xff]
        %v1776 = vld [vmem:[#allocation2 + $0x3a0] sm:$0xff]
        %v1777 = vld [vmem:[#allocation2 + $0x3a8] sm:$0xff]
        %v1778 = vld [vmem:[#allocation2 + $0x3b0] sm:$0xff]
        %v1779 = vld [vmem:[#allocation2 + $0x3b8] sm:$0xff]
        %v1780 = vld [vmem:[#allocation2 + $0x3c0] sm:$0xff]
        %v1781 = vld [vmem:[#allocation2 + $0x3c8] sm:$0xff]
        %v1782 = vld [vmem:[#allocation2 + $0x3d0] sm:$0xff]
        %v1783 = vld [vmem:[#allocation2 + $0x3d8] sm:$0xff]
        %v1784 = vld [vmem:[#allocation2 + $0x3e0] sm:$0xff]
        %v1785 = vld [vmem:[#allocation2 + $0x3e8] sm:$0xff]
        %v1786 = vld [vmem:[#allocation2 + $0x3f0] sm:$0xff]
        %v1787 = vld [vmem:[#allocation2 + $0x3f8] sm:$0xff]
        %v1788 = vld [vmem:[#allocation2 + $0x400] sm:$0xff]
        %v1789 = vld [vmem:[#allocation2 + $0x408] sm:$0xff]
        %v1790 = vld [vmem:[#allocation2 + $0x410] sm:$0xff]
        %v1791 = vld [vmem:[#allocation2 + $0x418] sm:$0xff]
        %v1792 = vld [vmem:[#allocation2 + $0x420] sm:$0xff]
        %v1793 = vld [vmem:[#allocation2 + $0x428] sm:$0xff]
        %v1794 = vld [vmem:[#allocation2 + $0x430] sm:$0xff]
        %v1795 = vld [vmem:[#allocation2 + $0x438] sm:$0xff]
        %v1796 = vld [vmem:[#allocation2 + $0x440] sm:$0xff]
        %v1797 = vld [vmem:[#allocation2 + $0x448] sm:$0xff]
        %v1798 = vld [vmem:[#allocation2 + $0x450] sm:$0xff]
        %v1799 = vld [vmem:[#allocation2 + $0x458] sm:$0xff]
        %v1800 = vld [vmem:[#allocation2 + $0x460] sm:$0xff]
        %v1801 = vld [vmem:[#allocation2 + $0x468] sm:$0xff]
        %v1802 = vld [vmem:[#allocation2 + $0x470] sm:$0xff]
        %v1803 = vld [vmem:[#allocation2 + $0x478] sm:$0xff]
        %v1804 = vld [vmem:[#allocation2 + $0x480] sm:$0xff]
        %v1805 = vld [vmem:[#allocation2 + $0x488] sm:$0xff]
        %v1806 = vld [vmem:[#allocation2 + $0x490] sm:$0xff]
        %v1807 = vld [vmem:[#allocation2 + $0x498] sm:$0xff]
        %v1808 = vld [vmem:[#allocation2 + $0x4a0] sm:$0xff]
        %v1809 = vld [vmem:[#allocation2 + $0x4a8] sm:$0xff]
        %v1810 = vld [vmem:[#allocation2 + $0x4b0] sm:$0xff]
        %v1811 = vld [vmem:[#allocation2 + $0x4b8] sm:$0xff]
        %v1812 = vld [vmem:[#allocation2 + $0x4c0] sm:$0xff]
        %v1813 = vld [vmem:[#allocation2 + $0x4c8] sm:$0xff]
        %v1814 = vld [vmem:[#allocation2 + $0x4d0] sm:$0xff]
        %v1815 = vld [vmem:[#allocation2 + $0x4d8] sm:$0xff]
        %v1816 = vld [vmem:[#allocation2 + $0x4e0] sm:$0xff]
        %v1817 = vld [vmem:[#allocation2 + $0x4e8] sm:$0xff]
        %v1818 = vld [vmem:[#allocation2 + $0x4f0] sm:$0xff]
        %v1819 = vld [vmem:[#allocation2 + $0x4f8] sm:$0xff]
        %v1820 = vld [vmem:[#allocation2 + $0x500] sm:$0xff]
        %v1821 = vld [vmem:[#allocation2 + $0x508] sm:$0xff]
        %v1822 = vld [vmem:[#allocation2 + $0x510] sm:$0xff]
        %v1823 = vld [vmem:[#allocation2 + $0x518] sm:$0xff]
        %v1824 = vld [vmem:[#allocation2 + $0x520] sm:$0xff]
        %v1825 = vld [vmem:[#allocation2 + $0x528] sm:$0xff]
        %v1826 = vld [vmem:[#allocation2 + $0x530] sm:$0xff]
        %v1827 = vld [vmem:[#allocation2 + $0x538] sm:$0xff]
        %v1828 = vld [vmem:[#allocation2 + $0x540] sm:$0xff]
        %v1829 = vld [vmem:[#allocation2 + $0x548] sm:$0xff]
        %v1830 = vld [vmem:[#allocation2 + $0x550] sm:$0xff]
        %v1831 = vld [vmem:[#allocation2 + $0x558] sm:$0xff]
        %v1832 = vld [vmem:[#allocation2 + $0x560] sm:$0xff]
        %v1833 = vld [vmem:[#allocation2 + $0x568] sm:$0xff]
        %v1834 = vld [vmem:[#allocation2 + $0x570] sm:$0xff]
        %v1835 = vld [vmem:[#allocation2 + $0x578] sm:$0xff]
        %v1836 = vld [vmem:[#allocation2 + $0x580] sm:$0xff]
        %v1837 = vld [vmem:[#allocation2 + $0x588] sm:$0xff]
        %v1838 = vld [vmem:[#allocation2 + $0x590] sm:$0xff]
        %v1839 = vld [vmem:[#allocation2 + $0x598] sm:$0xff]
        %v1840 = vld [vmem:[#allocation2 + $0x5a0] sm:$0xff]
        %v1841 = vld [vmem:[#allocation2 + $0x5a8] sm:$0xff]
        %v1842 = vld [vmem:[#allocation2 + $0x5b0] sm:$0xff]
        %v1843 = vld [vmem:[#allocation2 + $0x5b8] sm:$0xff]
        %v1844 = vld [vmem:[#allocation2 + $0x5c0] sm:$0xff]
        %v1845 = vld [vmem:[#allocation2 + $0x5c8] sm:$0xff]
        %v1846 = vld [vmem:[#allocation2 + $0x5d0] sm:$0xff]
        %v1847 = vld [vmem:[#allocation2 + $0x5d8] sm:$0xff]
        %v1848 = vld [vmem:[#allocation2 + $0x5e0] sm:$0xff]
        %v1849 = vpack.c.bf16 %v1667, %v1660
        %v1850 = vpack.c.bf16 %v1668, %v1661
        %v1851 = vpack.c.bf16 %v1669, %v1662
        %v1852 = vpack.c.bf16 %v1670, %v1663
        %v1853 = vpack.c.bf16 %v1671, %v1664
        %v1854 = vpack.c.bf16 %v1672, %v1665
        %v1855 = vpack.c.bf16 %v1673, %v1666
        %v1856 = vpack.c.bf16 %v1681, %v1674
        %v1857 = vpack.c.bf16 %v1682, %v1675
        %v1858 = vpack.c.bf16 %v1683, %v1676
        %v1859 = vpack.c.bf16 %v1684, %v1677
        %v1860 = vpack.c.bf16 %v1685, %v1678
        %v1861 = vpack.c.bf16 %v1686, %v1679
        %v1862 = vpack.c.bf16 %v1687, %v1680
        %v1863 = vpack.c.bf16 %v1695, %v1688
        %v1864 = vpack.c.bf16 %v1696, %v1689
        %v1865 = vpack.c.bf16 %v1697, %v1690
        %v1866 = vpack.c.bf16 %v1698, %v1691
        %v1867 = vpack.c.bf16 %v1699, %v1692
        %v1868 = vpack.c.bf16 %v1700, %v1693
        %v1869 = vpack.c.bf16 %v1701, %v1694
        %v1870 = vpack.c.bf16 %v1709, %v1702
        %v1871 = vpack.c.bf16 %v1710, %v1703
        %v1872 = vpack.c.bf16 %v1711, %v1704
        %v1873 = vpack.c.bf16 %v1712, %v1705
        %v1874 = vpack.c.bf16 %v1713, %v1706
        %v1875 = vpack.c.bf16 %v1714, %v1707
        %v1876 = vpack.c.bf16 %v1715, %v1708
        %v1877 = vpack.c.bf16 %v1723, %v1716
        %v1878 = vpack.c.bf16 %v1724, %v1717
        %v1879 = vpack.c.bf16 %v1725, %v1718
        %v1880 = vpack.c.bf16 %v1726, %v1719
        %v1881 = vpack.c.bf16 %v1727, %v1720
        %v1882 = vpack.c.bf16 %v1728, %v1721
        %v1883 = vpack.c.bf16 %v1729, %v1722
        %v1884 = vpack.c.bf16 %v1737, %v1730
        %v1885 = vpack.c.bf16 %v1738, %v1731
        %v1886 = vpack.c.bf16 %v1739, %v1732
        %v1887 = vpack.c.bf16 %v1740, %v1733
        %v1888 = vpack.c.bf16 %v1741, %v1734
        %v1889 = vpack.c.bf16 %v1742, %v1735
        %v1890 = vpack.c.bf16 %v1743, %v1736
        %v1891 = vpack.c.bf16 %v1751, %v1744
        %v1892 = vpack.c.bf16 %v1752, %v1745
        %v1893 = vpack.c.bf16 %v1753, %v1746
        %v1894 = vpack.c.bf16 %v1754, %v1747
        %v1895 = vpack.c.bf16 %v1755, %v1748
        %v1896 = vpack.c.bf16 %v1756, %v1749
        %v1897 = vpack.c.bf16 %v1757, %v1750
        %v1898 = vpack.c.bf16 %v1765, %v1758
        %v1899 = vpack.c.bf16 %v1766, %v1759
        %v1900 = vpack.c.bf16 %v1767, %v1760
        %v1901 = vpack.c.bf16 %v1768, %v1761
        %v1902 = vpack.c.bf16 %v1769, %v1762
        %v1903 = vpack.c.bf16 %v1770, %v1763
        %v1904 = vpack.c.bf16 %v1771, %v1764
        %v1905 = vpack.c.bf16 %v1779, %v1772
        %v1906 = vpack.c.bf16 %v1780, %v1773
        %v1907 = vpack.c.bf16 %v1781, %v1774
        %v1908 = vpack.c.bf16 %v1782, %v1775
        %v1909 = vpack.c.bf16 %v1783, %v1776
        %v1910 = vpack.c.bf16 %v1784, %v1777
        %v1911 = vpack.c.bf16 %v1785, %v1778
        %v1912 = vpack.c.bf16 %v1793, %v1786
        %v1913 = vpack.c.bf16 %v1794, %v1787
        %v1914 = vpack.c.bf16 %v1795, %v1788
        %v1915 = vpack.c.bf16 %v1796, %v1789
        %v1916 = vpack.c.bf16 %v1797, %v1790
        %v1917 = vpack.c.bf16 %v1798, %v1791
        %v1918 = vpack.c.bf16 %v1799, %v1792
        %v1919 = vpack.c.bf16 %v1807, %v1800
        %v1920 = vpack.c.bf16 %v1808, %v1801
        %v1921 = vpack.c.bf16 %v1809, %v1802
        %v1922 = vpack.c.bf16 %v1810, %v1803
        %v1923 = vpack.c.bf16 %v1811, %v1804
        %v1924 = vpack.c.bf16 %v1812, %v1805
        %v1925 = vpack.c.bf16 %v1813, %v1806
        %v1926 = vpack.c.bf16 %v1821, %v1814
        %v1927 = vpack.c.bf16 %v1822, %v1815
        %v1928 = vpack.c.bf16 %v1823, %v1816
        %v1929 = vpack.c.bf16 %v1824, %v1817
        %v1930 = vpack.c.bf16 %v1825, %v1818
        %v1931 = vpack.c.bf16 %v1826, %v1819
        %v1932 = vpack.c.bf16 %v1827, %v1820
        %v1933 = vpack.c.bf16 %v1835, %v1828
        %v1934 = vpack.c.bf16 %v1836, %v1829
        %v1935 = vpack.c.bf16 %v1837, %v1830
        %v1936 = vpack.c.bf16 %v1838, %v1831
        %v1937 = vpack.c.bf16 %v1839, %v1832
        %v1938 = vpack.c.bf16 %v1840, %v1833
        %v1939 = vpack.c.bf16 %v1841, %v1834
        %v1940 = vpack.c.bf16 %v1842, %v1842
        %v1941 = vpack.c.bf16 %v1843, %v1843
        %v1942 = vpack.c.bf16 %v1844, %v1844
        %v1943 = vpack.c.bf16 %v1845, %v1845
        %v1944 = vpack.c.bf16 %v1846, %v1846
        %v1945 = vpack.c.bf16 %v1847, %v1847
        %v1946 = vpack.c.bf16 %v1848, %v1848
        %v1947 = vld [vmem:[%s1] sm:$0xff]
        %v1949 = vunpack.c.l.b16 %v1947
        %v1950 = vunpack.c.h.b16 %v1947
        %v1951 = vpack.c.b16 %v1949, %v1949
        %v1952 = vpack.c.b16 %v1950, %v1950
        %vm1954 = vcmask 719872
        %v1956 = vsel %vm1954, %v1952, 0
        %vm1958 = vcmask 1043456
        %v1960 = vsel %vm1958, %v1940, 0
        %v1963 = vsel %vm1958, %v1941, 0
        %v1966 = vsel %vm1958, %v1942, 0
        %v1969 = vsel %vm1958, %v1943, 0
        %v1972 = vsel %vm1958, %v1944, 0
        %v1975 = vsel %vm1958, %v1945, 0
        %v1978 = vsel %vm1958, %v1946, 0
        %1980 = vmatprep.subr.bf16.mxu0 %v1850
        %1981 = vmatpush1.bf16.msra.mxu0 %v1849
        %1982 = vmatprep.subr.bf16.mxu0 %v1857
        %1983 = vmatpush1.bf16.msra.mxu0 %v1856
        %1984 = vmatprep.subr.bf16.mxu0 %v1864
        %1985 = vmatpush1.bf16.msra.mxu0 %v1863
        %1986 = vmatprep.subr.bf16.mxu0 %v1871
        %1987 = vmatpush1.bf16.msra.mxu0 %v1870
        %1988 = vmatprep.subr.bf16.mxu0 %v1878
        %1989 = vmatpush1.bf16.msra.mxu0 %v1877
        %1990 = vmatprep.subr.bf16.mxu0 %v1885
        %1991 = vmatpush1.bf16.msra.mxu0 %v1884
        %1992 = vmatprep.subr.bf16.mxu0 %v1892
        %1993 = vmatpush1.bf16.msra.mxu0 %v1891
        %1994 = vmatprep.subr.bf16.mxu0 %v1899
        %1995 = vmatpush1.bf16.msra.mxu0 %v1898
        %1996 = vmatprep.subr.bf16.mxu0 %v1906
        %1997 = vmatpush1.bf16.msra.mxu0 %v1905
        %1998 = vmatprep.subr.bf16.mxu0 %v1913
        %1999 = vmatpush1.bf16.msra.mxu0 %v1912
        %2000 = vmatprep.subr.bf16.mxu0 %v1920
        %2001 = vmatpush1.bf16.msra.mxu0 %v1919
        %2002 = vmatprep.subr.bf16.mxu0 %v1927
        %2003 = vmatpush1.bf16.msra.mxu0 %v1926
        %2004 = vmatprep.subr.bf16.mxu0 %v1934
        %2005 = vmatpush1.bf16.msra.mxu0 %v1933
        %2006 = vmatprep.subr.bf16.mxu0 %v1963
        %2007 = vmatpush1.bf16.msra.mxu0 %v1960
        %2008 = vmatprep.subr.bf16.mxu0 0
        %2009 = vmatpush1.bf16.msra.mxu0 0
        %2010 = vmatprep.subr.bf16.mxu0 0
        %2011 = vmatpush1.bf16.msra.mxu0 0
        %2012 = vmatprep.mubr.bf16.mxu0 %v1956
        %2013 = vmatmul.mubr.bf16.gmra.mrb[0].mxu0 %v1951
        %v2014 = vpop.f32.mrb[0].mxu0
        %v2015 = vadd.f32 0.0, %v2014
        %v2016 = vpop.f32.mrb[0].mxu0
        %v2017 = vadd.f32 0.0, %v2016
        %v2018 = vpop.f32.mrb[0].mxu0
        %v2019 = vpop.f32.mrb[0].mxu0
        %2020 = vdwg.mxu0
        %2021 = vmatprep.subr.bf16.mxu0 %v1852
        %2022 = vmatpush1.bf16.msra.mxu0 %v1851
        %2023 = vmatprep.subr.bf16.mxu0 %v1859
        %2024 = vmatpush1.bf16.msra.mxu0 %v1858
        %2025 = vmatprep.subr.bf16.mxu0 %v1866
        %2026 = vmatpush1.bf16.msra.mxu0 %v1865
        %2027 = vmatprep.subr.bf16.mxu0 %v1873
        %2028 = vmatpush1.bf16.msra.mxu0 %v1872
        %2029 = vmatprep.subr.bf16.mxu0 %v1880
        %2030 = vmatpush1.bf16.msra.mxu0 %v1879
        %2031 = vmatprep.subr.bf16.mxu0 %v1887
        %2032 = vmatpush1.bf16.msra.mxu0 %v1886
        %2033 = vmatprep.subr.bf16.mxu0 %v1894
        %2034 = vmatpush1.bf16.msra.mxu0 %v1893
        %2035 = vmatprep.subr.bf16.mxu0 %v1901
        %2036 = vmatpush1.bf16.msra.mxu0 %v1900
        %2037 = vmatprep.subr.bf16.mxu0 %v1908
        %2038 = vmatpush1.bf16.msra.mxu0 %v1907
        %2039 = vmatprep.subr.bf16.mxu0 %v1915
        %2040 = vmatpush1.bf16.msra.mxu0 %v1914
        %2041 = vmatprep.subr.bf16.mxu0 %v1922
        %2042 = vmatpush1.bf16.msra.mxu0 %v1921
        %2043 = vmatprep.subr.bf16.mxu0 %v1929
        %2044 = vmatpush1.bf16.msra.mxu0 %v1928
        %2045 = vmatprep.subr.bf16.mxu0 %v1936
        %2046 = vmatpush1.bf16.msra.mxu0 %v1935
        %2047 = vmatprep.subr.bf16.mxu0 %v1969
        %2048 = vmatpush1.bf16.msra.mxu0 %v1966
        %2049 = vmatprep.subr.bf16.mxu0 0
        %2050 = vmatpush1.bf16.msra.mxu0 0
        %2051 = vmatprep.subr.bf16.mxu0 0
        %2052 = vmatpush1.bf16.msra.mxu0 0
        %2053 = vmatprep.mubr.bf16.mxu0 %v1956
        %2054 = vmatmul.mubr.bf16.gmra.mrb[0].mxu0 %v1951
        %v2055 = vpop.f32.mrb[0].mxu0
        %v2056 = vadd.f32 0.0, %v2055
        %v2057 = vpop.f32.mrb[0].mxu0
        %v2058 = vadd.f32 0.0, %v2057
        %v2059 = vpop.f32.mrb[0].mxu0
        %v2060 = vpop.f32.mrb[0].mxu0
        %2061 = vdwg.mxu0
        %2062 = vmatprep.subr.bf16.mxu0 %v1854
        %2063 = vmatpush1.bf16.msra.mxu0 %v1853
        %2064 = vmatprep.subr.bf16.mxu0 %v1861
        %2065 = vmatpush1.bf16.msra.mxu0 %v1860
        %2066 = vmatprep.subr.bf16.mxu0 %v1868
        %2067 = vmatpush1.bf16.msra.mxu0 %v1867
        %2068 = vmatprep.subr.bf16.mxu0 %v1875
        %2069 = vmatpush1.bf16.msra.mxu0 %v1874
        %2070 = vmatprep.subr.bf16.mxu0 %v1882
        %2071 = vmatpush1.bf16.msra.mxu0 %v1881
        %2072 = vmatprep.subr.bf16.mxu0 %v1889
        %2073 = vmatpush1.bf16.msra.mxu0 %v1888
        %2074 = vmatprep.subr.bf16.mxu0 %v1896
        %2075 = vmatpush1.bf16.msra.mxu0 %v1895
        %2076 = vmatprep.subr.bf16.mxu0 %v1903
        %2077 = vmatpush1.bf16.msra.mxu0 %v1902
        %2078 = vmatprep.subr.bf16.mxu0 %v1910
        %2079 = vmatpush1.bf16.msra.mxu0 %v1909
        %2080 = vmatprep.subr.bf16.mxu0 %v1917
        %2081 = vmatpush1.bf16.msra.mxu0 %v1916
        %2082 = vmatprep.subr.bf16.mxu0 %v1924
        %2083 = vmatpush1.bf16.msra.mxu0 %v1923
        %2084 = vmatprep.subr.bf16.mxu0 %v1931
        %2085 = vmatpush1.bf16.msra.mxu0 %v1930
        %2086 = vmatprep.subr.bf16.mxu0 %v1938
        %2087 = vmatpush1.bf16.msra.mxu0 %v1937
        %2088 = vmatprep.subr.bf16.mxu0 %v1975
        %2089 = vmatpush1.bf16.msra.mxu0 %v1972
        %2090 = vmatprep.subr.bf16.mxu0 0
        %2091 = vmatpush1.bf16.msra.mxu0 0
        %2092 = vmatprep.subr.bf16.mxu0 0
        %2093 = vmatpush1.bf16.msra.mxu0 0
        %2094 = vmatprep.mubr.bf16.mxu0 %v1956
        %2095 = vmatmul.mubr.bf16.gmra.mrb[0].mxu0 %v1951
        %v2096 = vpop.f32.mrb[0].mxu0
        %v2097 = vadd.f32 0.0, %v2096
        %v2098 = vpop.f32.mrb[0].mxu0
        %v2099 = vadd.f32 0.0, %v2098
        %v2100 = vpop.f32.mrb[0].mxu0
        %v2101 = vpop.f32.mrb[0].mxu0
        %2102 = vdwg.mxu0
        %2103 = vmatprep.subr.bf16.mxu0 0
        %2104 = vmatpush1.bf16.msra.mxu0 %v1855
        %2105 = vmatprep.subr.bf16.mxu0 0
        %2106 = vmatpush1.bf16.msra.mxu0 %v1862
        %2107 = vmatprep.subr.bf16.mxu0 0
        %2108 = vmatpush1.bf16.msra.mxu0 %v1869
        %2109 = vmatprep.subr.bf16.mxu0 0
        %2110 = vmatpush1.bf16.msra.mxu0 %v1876
        %2111 = vmatprep.subr.bf16.mxu0 0
        %2112 = vmatpush1.bf16.msra.mxu0 %v1883
        %2113 = vmatprep.subr.bf16.mxu0 0
        %2114 = vmatpush1.bf16.msra.mxu0 %v1890
        %2115 = vmatprep.subr.bf16.mxu0 0
        %2116 = vmatpush1.bf16.msra.mxu0 %v1897
        %2117 = vmatprep.subr.bf16.mxu0 0
        %2118 = vmatpush1.bf16.msra.mxu0 %v1904
        %2119 = vmatprep.subr.bf16.mxu0 0
        %2120 = vmatpush1.bf16.msra.mxu0 %v1911
        %2121 = vmatprep.subr.bf16.mxu0 0
        %2122 = vmatpush1.bf16.msra.mxu0 %v1918
        %2123 = vmatprep.subr.bf16.mxu0 0
        %2124 = vmatpush1.bf16.msra.mxu0 %v1925
        %2125 = vmatprep.subr.bf16.mxu0 0
        %2126 = vmatpush1.bf16.msra.mxu0 %v1932
        %2127 = vmatprep.subr.bf16.mxu0 0
        %2128 = vmatpush1.bf16.msra.mxu0 %v1939
        %2129 = vmatprep.subr.bf16.mxu0 0
        %2130 = vmatpush1.bf16.msra.mxu0 %v1978
        %2131 = vmatprep.subr.bf16.mxu0 0
        %2132 = vmatpush1.bf16.msra.mxu0 0
        %2133 = vmatprep.subr.bf16.mxu0 0
        %2134 = vmatpush1.bf16.msra.mxu0 0
        %2135 = vmatprep.mubr.bf16.mxu0 %v1956
        %2136 = vmatmul.mubr.bf16.gmra.mrb[0].mxu0 %v1951
        %v2137 = vpop.f32.mrb[0].mxu0
        %v2138 = vadd.f32 0.0, %v2137
        %v2139 = vpop.f32.mrb[0].mxu0
        %v2140 = vpop.f32.mrb[0].mxu0
        %v2141 = vpop.f32.mrb[0].mxu0
        %2142 = vdwg.mxu0
        %v2143 = vld [vmem:[%s2] sm:$0xff]
        %v2145 = vlaneseq
        %v2146 = vshrl.u32 %v2145, 7
        %v2147 = vsub.s32 0, %v2146
        %v2148 = vrot.slane %v2143, %v2147
        %v2149 = vlaneseq
        %v2150 = vshrl.u32 %v2149, 7
        %v2151 = vsub.s32 1, %v2150
        %v2152 = vrot.slane %v2143, %v2151
        %v2153 = vlaneseq
        %v2154 = vshrl.u32 %v2153, 7
        %v2155 = vsub.s32 2, %v2154
        %v2156 = vrot.slane %v2143, %v2155
        %v2157 = vlaneseq
        %v2158 = vshrl.u32 %v2157, 7
        %v2159 = vsub.s32 3, %v2158
        %v2160 = vrot.slane %v2143, %v2159
        %v2161 = vlaneseq
        %v2162 = vshrl.u32 %v2161, 7
        %v2163 = vsub.s32 4, %v2162
        %v2164 = vrot.slane %v2143, %v2163
        %v2165 = vlaneseq
        %v2166 = vshrl.u32 %v2165, 7
        %v2167 = vsub.s32 5, %v2166
        %v2168 = vrot.slane %v2143, %v2167
        %v2169 = vlaneseq
        %v2170 = vshrl.u32 %v2169, 7
        %v2171 = vsub.s32 6, %v2170
        %v2172 = vrot.slane %v2143, %v2171
        %v2180 = vmul.f32 %v2015, %v2148
        %v2181 = vmul.f32 %v2017, %v2152
        %v2182 = vmul.f32 %v2056, %v2156
        %v2183 = vmul.f32 %v2058, %v2160
        %v2184 = vmul.f32 %v2097, %v2164
        %v2185 = vmul.f32 %v2099, %v2168
        %v2186 = vmul.f32 %v2138, %v2172
        %v2187 = vadd.f32 %v2180, %v2181
        %v2188 = vadd.f32 %v2187, %v2182
        %v2189 = vadd.f32 %v2188, %v2183
        %v2190 = vadd.f32 %v2189, %v2184
        %v2191 = vadd.f32 %v2190, %v2185
        %v2192 = vadd.f32 %v2191, %v2186
        %2193 = vadd.xlane.f32.xlu0 %v2192
        %v2194 = vpop.xlane.xlu0 %2193
        %v2195 = vmul.f32 %v2194, 0.001953125
        %v2196 = vsub.f32 %v2015, %v2195
        %v2197 = vsub.f32 %v2017, %v2195
        %v2198 = vsub.f32 %v2056, %v2195
        %v2199 = vsub.f32 %v2058, %v2195
        %v2200 = vsub.f32 %v2097, %v2195
        %v2201 = vsub.f32 %v2099, %v2195
        %v2202 = vsub.f32 %v2138, %v2195
        %v2203 = vmul.f32 %v2196, %v2148
        %v2204 = vmul.f32 %v2197, %v2152
        %v2205 = vmul.f32 %v2198, %v2156
        %v2206 = vmul.f32 %v2199, %v2160
        %v2207 = vmul.f32 %v2200, %v2164
        %v2208 = vmul.f32 %v2201, %v2168
        %v2209 = vmul.f32 %v2202, %v2172
        %v2210 = vmul.f32 %v2203, %v2203
        %v2211 = vmul.f32 %v2204, %v2204
        %v2212 = vmul.f32 %v2205, %v2205
        %v2213 = vmul.f32 %v2206, %v2206
        %v2214 = vmul.f32 %v2207, %v2207
        %v2215 = vmul.f32 %v2208, %v2208
        %v2216 = vmul.f32 %v2209, %v2209
        %v2217 = vadd.f32 %v2210, %v2211
        %v2218 = vadd.f32 %v2217, %v2212
        %v2219 = vadd.f32 %v2218, %v2213
        %v2220 = vadd.f32 %v2219, %v2214
        %v2221 = vadd.f32 %v2220, %v2215
        %v2222 = vadd.f32 %v2221, %v2216
        %2223 = vadd.xlane.f32.xlu0 %v2222
        %v2224 = vpop.xlane.xlu0 %2223
        %v2225 = vmul.f32 %v2224, 0.001953125
        %v2226 = vld [vmem:[%s3] sm:$0xff]
        %v2227 = vadd.f32 %v2225, 1e-05
        %v2228 = vrsqrt.pop %v2227
        %v2229 = vmul.f32 %v2226, %v2228
        %2231 = vset.pattern.permute.xlu0 0
        %2232 = vperm.xlu0 %2231, %v2229
        %v2233 = vpop.permute.xlu0 %2232
        %v2235 = vmul.f32 %v2196, %v2233
        %v2236 = vmul.f32 %v2197, %v2233
        %v2237 = vmul.f32 %v2198, %v2233
        %v2238 = vmul.f32 %v2199, %v2233
        %v2239 = vmul.f32 %v2200, %v2233
        %v2240 = vmul.f32 %v2201, %v2233
        %v2241 = vmul.f32 %v2202, %v2233
        %v2242 = vld [vmem:[%s4] sm:$0xff]
        %2244 = vset.pattern.permute.xlu0 0
        %2245 = vperm.xlu0 %2244, %v2242
        %v2246 = vpop.permute.xlu0 %2245
        %v2248 = vadd.f32 %v2235, %v2246
        %v2249 = vadd.f32 %v2236, %v2246
        %v2250 = vadd.f32 %v2237, %v2246
        %v2251 = vadd.f32 %v2238, %v2246
        %v2252 = vadd.f32 %v2239, %v2246
        %v2253 = vadd.f32 %v2240, %v2246
        %v2254 = vadd.f32 %v2241, %v2246
        %vm2255 = vcmp.ge.f32.partialorder %v2248, 0.0
        %vm2256 = vcmp.ge.f32.partialorder %v2249, 0.0
        %vm2257 = vcmp.ge.f32.partialorder %v2250, 0.0
        %vm2258 = vcmp.ge.f32.partialorder %v2251, 0.0
        %vm2259 = vcmp.ge.f32.partialorder %v2252, 0.0
        %vm2260 = vcmp.ge.f32.partialorder %v2253, 0.0
        %vm2261 = vcmp.ge.f32.partialorder %v2254, 0.0
        %v2262 = vmul.f32 %v2248, 0.22916667
        %v2263 = vmul.f32 %v2249, 0.22916667
        %v2264 = vmul.f32 %v2250, 0.22916667
        %v2265 = vmul.f32 %v2251, 0.22916667
        %v2266 = vmul.f32 %v2252, 0.22916667
        %v2267 = vmul.f32 %v2253, 0.22916667
        %v2268 = vmul.f32 %v2254, 0.22916667
        %v2269 = vsel %vm2255, %v2248, %v2262
        %v2270 = vsel %vm2256, %v2249, %v2263
        %v2271 = vsel %vm2257, %v2250, %v2264
        %v2272 = vsel %vm2258, %v2251, %v2265
        %v2273 = vsel %vm2259, %v2252, %v2266
        %v2274 = vsel %vm2260, %v2253, %v2267
        %v2275 = vsel %vm2261, %v2254, %v2268
        %2276 = vst [vmem:[%s240] sm:$0xff] %v2269
        %2277 = vst [vmem:[%s240 + $0x8] sm:$0xff] %v2270
        %2278 = vst [vmem:[%s240 + $0x10] sm:$0xff] %v2271
        %2279 = vst [vmem:[%s240 + $0x18] sm:$0xff] %v2272
        %2280 = vst [vmem:[%s240 + $0x20] sm:$0xff] %v2273
        %2281 = vst [vmem:[%s240 + $0x28] sm:$0xff] %v2274
        %2282 = vst [vmem:[%s240 + $0x30] sm:$0xff] %v2275
        %s2283 = sand.u32 %s140, 1
        %s2284 = scalar_lea.sflag [#allocation5], %s2283
        %s2285 = sand.u32 %s140, 1
        %s2286 = smul.addr %s2285, 56
        %s2287 = scalar_lea.vmem [#allocation6], %s2286
        // Predicated region
        $region45: #{tpu_custom_call.1} parent=39 // pred_check
          %p2288 = pneg %p150
        $region46: #{tpu_custom_call.1} parent=39 // pred_check_branch
          %2290 = sbr.rel (%p2288) target = $region48
        $region47: #{tpu_custom_call.1} parent=39 // pred_region
          %s2292 = ssub.s32 896, 896
          %2293 = vsyncadd %s2284, %s2292
          %s2294 = smul.addr %s22, 7
          %s2295 = smul.addr %s2294, 128
          %s2296 = scalar_lea.hbm %s5, %s2295
          %s2298 = sshll.u32 %s2287, 4
          %s2299 = int_to_ptr.vmem [resolvable:$true] %s2298
          %2301 = dma.vmem_to_hbm [thread:$0]  %s2299, 896, %s2296, %s2284
        $region48: #{tpu_custom_call.1} parent=39 // pred_fallthru
          _
      $region40: #{tpu_custom_call.1} parent=5 // pred_fallthru
        _
      %p2302 = scmp.le.s32.totalorder 2, %s17
      // Predicated region
      $region49: #{tpu_custom_call.1} parent=5 // pred_check
        %p2303 = pneg %p2302
      $region50: #{tpu_custom_call.1} parent=5 // pred_check_branch
        %2305 = sbr.rel (%p2303) target = $region52
      $region51: #{tpu_custom_call.1} parent=5 // pred_region
        %s2306 = ssub.s32 %s17, 2
        // Predicated region
        $region53: #{tpu_custom_call.1} parent=51 // pred_check
          %p2307 = pneg %p156
        $region54: #{tpu_custom_call.1} parent=51 // pred_check_branch
          %2309 = sbr.rel (%p2307) target = $region56
        $region55: #{tpu_custom_call.1} parent=51 // pred_region
          %s2310 = sand.u32 %s141, 1
          %s2311 = scalar_lea.sflag [#allocation5], %s2310
          %s2312 = sand.u32 %s141, 1
          %s2313 = smul.addr %s2312, 56
          %s2314 = scalar_lea.vmem [#allocation6], %s2313
          %2315 = dma.done %s2311, 896
        $region56: #{tpu_custom_call.1} parent=51 // pred_fallthru
          _
      $region52: #{tpu_custom_call.1} parent=5 // pred_fallthru
        _
    $region6: #{tpu_custom_call.1} parent=1 // loop_footer
      %s21 = sadd.s32 1, %s17
    $region7: #{tpu_custom_call.1} parent=1 // loop_footer_branch
      %16 = sbr.rel target = $region3
    $region8: #{tpu_custom_call.1} parent=1 // loop_exit
      _
    %2316 = vsyncpa [#allocation4], 1
    %s2317 = scalar_lea.sflag [#allocation4], 1
    %2318 = vsyncpa %s2317, 1
    %2319 = vsyncpa [#allocation5], 1
    %s2320 = scalar_lea.sflag [#allocation5], 1
    %2321 = vsyncpa %s2320, 1

</llo_original>
